<compile_context>
chip_gen: v7x
topology: tpu7x:2x2x1
jax: 0.10.0
libtpu: 0.0.40
codegen_flags: <defaults>
</compile_context>

<pallas_src>
import jax
import jax.numpy as jnp
from jax.experimental import pallas as pl
from jax.experimental.pallas import tpu as pltpu


def _round_up(n: int, m: int) -> int:
    return ((n + m - 1) // m) * m


# ---------------------------------------------------------------------------
# Kernels
# ---------------------------------------------------------------------------
def _dae_resident_kernel(x_ref, w1_ref, b1_ref, w2_ref, b2_ref,
                         w3_ref, b3_ref, w4_ref, b4_ref, out_ref):
    """All weights resident in VMEM; one batch tile per grid step."""
    x = x_ref[...].astype(jnp.bfloat16)        # in-kernel cast (hidden under MXU)
    # enc layer 1: Linear + ReLU   (Dropout is identity in eval mode)
    h = jnp.dot(x, w1_ref[...], preferred_element_type=jnp.float32)
    h = jnp.maximum(h + b1_ref[...], 0.0).astype(jnp.bfloat16)
    # enc layer 2: Linear + ReLU
    z = jnp.dot(h, w2_ref[...], preferred_element_type=jnp.float32)
    z = jnp.maximum(z + b2_ref[...], 0.0).astype(jnp.bfloat16)
    # dec layer 1: Linear + ReLU
    d = jnp.dot(z, w3_ref[...], preferred_element_type=jnp.float32)
    d = jnp.maximum(d + b3_ref[...], 0.0).astype(jnp.bfloat16)
    # dec layer 2: Linear (no activation)
    y = jnp.dot(d, w4_ref[...], preferred_element_type=jnp.float32)
    out_ref[...] = (y + b4_ref[...]).astype(out_ref.dtype)


def _dae_enc_stream_kernel(x_ref, w1_ref, b1_ref, w2_ref, b2_ref, z_ref, h_acc):
    """Encoder with W1 streamed over K-tiles (grid axis 1, reduction last)."""
    k = pl.program_id(1)

    @pl.when(k == 0)
    def _():
        h_acc[...] = jnp.zeros_like(h_acc)

    x = x_ref[...].astype(jnp.bfloat16)
    h_acc[...] += jnp.dot(x, w1_ref[...], preferred_element_type=jnp.float32)

    @pl.when(k == pl.num_programs(1) - 1)
    def _():
        h = jnp.maximum(h_acc[...] + b1_ref[...], 0.0).astype(jnp.bfloat16)
        z = jnp.dot(h, w2_ref[...], preferred_element_type=jnp.float32)
        z_ref[...] = jnp.maximum(z + b2_ref[...], 0.0).astype(z_ref.dtype)


def _dae_dec_stream_kernel(z_ref, w3_ref, b3_ref, w4_ref, b4_ref, out_ref, d_buf):
    """Decoder with W4 streamed over N-tiles; hidden 'd' computed once per batch tile."""
    n = pl.program_id(1)

    @pl.when(n == 0)
    def _():
        d = jnp.dot(z_ref[...], w3_ref[...], preferred_element_type=jnp.float32)
        d_buf[...] = jnp.maximum(d + b3_ref[...], 0.0).astype(d_buf.dtype)

    y = jnp.dot(d_buf[...], w4_ref[...], preferred_element_type=jnp.float32)
    out_ref[...] = (y + b4_ref[...]).astype(out_ref.dtype)


# ---------------------------------------------------------------------------
# Wrapper helpers
# ---------------------------------------------------------------------------
def prepare_params(params, in_dim):
    """Pad params to lane-dense (x128) dims and cast weights to bf16 ONCE.

    Cache the returned dict across forward calls: it removes the per-call
    HBM pad/cast traffic over the weight matrices."""
    w1, b1, w2, b2, w3, b3, w4, b4 = params
    hid, latent = w1.shape[1], w2.shape[1]
    Dp = _round_up(in_dim, 128)
    Hp = _round_up(hid, 128)
    Lp = _round_up(latent, 128)

    def padw(w, rows, cols):
        return jnp.pad(w, ((0, rows - w.shape[0]),
                           (0, cols - w.shape[1]))).astype(jnp.bfloat16)

    def padb(b, cols):
        b = b.reshape(1, -1)
        return jnp.pad(b, ((0, 0), (0, cols - b.shape[1]))).astype(jnp.float32)

    return dict(
        w1=padw(w1, Dp, Hp), b1=padb(b1, Hp),
        w2=padw(w2, Hp, Lp), b2=padb(b2, Lp),
        w3=padw(w3, Lp, Hp), b3=padb(b3, Hp),
        w4=padw(w4, Hp, Dp), b4=padb(b4, Dp),
        in_dim=in_dim, hid=hid, latent=latent, Dp=Dp, Hp=Hp, Lp=Lp)


def _vmem_budget_bytes():
    """~85% of physical VMEM (per core): headroom for compiler scratch / sems."""
    try:
        cap = int(pltpu.get_tpu_info().vmem_capacity_bytes)
        cap = min(max(cap, 32 << 20), 128 << 20)
    except Exception:
        cap = 64 << 20          # conservative fallback (v7x per-TC)
    return int(0.85 * cap)


def _pick_bm(B, bm_max=256):
    """Minimal-padding batch tile; >= 2 grid steps when B allows (v7x megacore)."""
    B16 = _round_up(B, 16)
    if B16 <= 32:
        return B16
    if B16 <= 2 * bm_max:
        return _round_up((B + 1) // 2, 16)
    return bm_max


def _pick_feature_tile(Dp, target):
    t = min(target, Dp)
    while Dp % t:
        t -= 128
    return t


# ---------------------------------------------------------------------------
# Forward
# ---------------------------------------------------------------------------
def dae_forward(x, prepped, *, bm_max=256, force_stream=False, feature_tile=512):
    """DAE forward. x: [B, in_dim] f32. prepped: output of prepare_params()."""
    B, in_dim = x.shape
    assert in_dim == prepped["in_dim"]
    Dp, Hp, Lp = prepped["Dp"], prepped["Hp"], prepped["Lp"]
    w1, b1 = prepped["w1"], prepped["b1"]
    w2, b2 = prepped["w2"], prepped["b2"]
    w3, b3 = prepped["w3"], prepped["b3"]
    w4, b4 = prepped["w4"], prepped["b4"]

    # Batch / feature padding of x only (weights were padded once at prep time).
    bm = _pick_bm(B, bm_max)
    Bp = _round_up(B, bm)
    if Bp != B or Dp != in_dim:
        x = jnp.pad(x, ((0, Bp - B), (0, Dp - in_dim)))
    nb = Bp // bm

    budget = _vmem_budget_bytes()
    w_bytes = 2 * (Dp * Hp + Hp * Lp + Lp * Hp + Hp * Dp)
    b_bytes = 4 * (2 * Hp + Lp + Dp)
    io_bytes = 2 * bm * Dp * 4 + 2 * bm * Dp * 4           # double-buffered x/out (f32)
    act_bytes = bm * (3 * Hp + Lp + Dp) * 6                 # live f32+bf16 intermediates
    resident_bytes = int(1.15 * (w_bytes + b_bytes + io_bytes + act_bytes))
    use_stream = force_stream or resident_bytes > budget

    if not use_stream:
        # ---------------- fully-resident weights, single pallas_call ----------
        def inv(shape):       # grid-invariant: single-buffered, resident once
            return pl.BlockSpec(shape, lambda i: (0, 0),
                                pipeline_mode=pl.Buffered(1))

        flops = 2 * Bp * (Dp * Hp + Hp * Lp + Lp * Hp + Hp * Dp)
        cost = pl.CostEstimate(flops=int(flops), transcendentals=0,
                               bytes_accessed=int(Bp * Dp * 8 + w_bytes + b_bytes))

        out = pl.pallas_call(
            _dae_resident_kernel,
            out_shape=jax.ShapeDtypeStruct((Bp, Dp), jnp.float32),
            grid_spec=pltpu.PrefetchScalarGridSpec(
                num_scalar_prefetch=0,
                grid=(nb,),
                in_specs=[
                    pl.BlockSpec((bm, Dp), lambda i: (i, 0)),   # x tile (f32)
                    inv((Dp, Hp)), inv((1, Hp)),                # W1, b1
                    inv((Hp, Lp)), inv((1, Lp)),                # W2, b2
                    inv((Lp, Hp)), inv((1, Hp)),                # W3, b3
                    inv((Hp, Dp)), inv((1, Dp)),                # W4, b4
                ],
                out_specs=pl.BlockSpec((bm, Dp), lambda i: (i, 0)),
            ),
            compiler_params=pltpu.CompilerParams(
                dimension_semantics=("parallel",),
                vmem_limit_bytes=budget),
            cost_estimate=cost,
        )(x, w1, b1, w2, b2, w3, b3, w4, b4)
        return out[:B, :in_dim]

    # -------------- large-in_dim path: stream W1 (K-tiles) / W4 (N-tiles) -----
    tk = _pick_feature_tile(Dp, feature_tile)
    tn = _pick_feature_tile(Dp, feature_tile)
    Kt, Nt = Dp // tk, Dp // tn

    def inv2(shape):
        return pl.BlockSpec(shape, lambda i, k: (0, 0),
                            pipeline_mode=pl.Buffered(1))

    enc_cost = pl.CostEstimate(
        flops=int(2 * Bp * (Dp * Hp + Hp * Lp)), transcendentals=0,
        bytes_accessed=int(Bp * Dp * 4 + 2 * Dp * Hp + 2 * Hp * Lp + Bp * Lp * 2))
    z = pl.pallas_call(
        _dae_enc_stream_kernel,
        out_shape=jax.ShapeDtypeStruct((Bp, Lp), jnp.bfloat16),
        grid_spec=pltpu.PrefetchScalarGridSpec(
            num_scalar_prefetch=0,
            grid=(nb, Kt),
            in_specs=[
                pl.BlockSpec((bm, tk), lambda i, k: (i, k)),    # x K-tile
                pl.BlockSpec((tk, Hp), lambda i, k: (k, 0)),    # W1 K-tile (streamed)
                inv2((1, Hp)),                                  # b1
                inv2((Hp, Lp)), inv2((1, Lp)),                  # W2, b2 (resident)
            ],
            out_specs=pl.BlockSpec((bm, Lp), lambda i, k: (i, 0)),
            scratch_shapes=[pltpu.VMEM((bm, Hp), jnp.float32)],  # h accumulator
        ),
        compiler_params=pltpu.CompilerParams(
            dimension_semantics=("parallel", "arbitrary"),
            vmem_limit_bytes=budget),
        cost_estimate=enc_cost,
    )(x, w1, b1, w2, b2)

    dec_cost = pl.CostEstimate(
        flops=int(2 * Bp * (Lp * Hp + Hp * Dp)), transcendentals=0,
        bytes_accessed=int(Bp * Lp * 2 + 2 * Lp * Hp + 2 * Hp * Dp + Bp * Dp * 4))
    out = pl.pallas_call(
        _dae_dec_stream_kernel,
        out_shape=jax.ShapeDtypeStruct((Bp, Dp), jnp.float32),
        grid_spec=pltpu.PrefetchScalarGridSpec(
            num_scalar_prefetch=0,
            grid=(nb, Nt),
            in_specs=[
                pl.BlockSpec((bm, Lp), lambda i, n: (i, 0)),    # z (latent) tile
                inv2((Lp, Hp)), inv2((1, Hp)),                  # W3, b3 (resident)
                pl.BlockSpec((Hp, tn), lambda i, n: (0, n)),    # W4 N-tile (streamed)
                pl.BlockSpec((1, tn), lambda i, n: (0, n)),     # b4 N-tile
            ],
            out_specs=pl.BlockSpec((bm, tn), lambda i, n: (i, n)),
            scratch_shapes=[pltpu.VMEM((bm, Hp), jnp.bfloat16)],  # d reuse buffer
        ),
        compiler_params=pltpu.CompilerParams(
            dimension_semantics=("parallel", "arbitrary"),
            vmem_limit_bytes=budget),
        cost_estimate=dec_cost,
    )(z, w3, b3, w4, b4)
    return out[:B, :in_dim]


# ---------------------------------------------------------------------------
# Init + reference
# ---------------------------------------------------------------------------
def init_params(key, in_dim, latent=256):
    """Deterministic PyTorch-Linear-style init (uniform +/- 1/sqrt(fan_in))."""
    hid = max(512, in_dim // 4)

    def linear(k, fan_in, fan_out):
        kw, kb = jax.random.split(k)
        bound = 1.0 / jnp.sqrt(fan_in)
        w = jax.random.uniform(kw, (fan_in, fan_out), jnp.float32, -bound, bound)
        b = jax.random.uniform(kb, (1, fan_out), jnp.float32, -bound, bound)
        return w, b

    k1, k2, k3, k4 = jax.random.split(key, 4)
    w1, b1 = linear(k1, in_dim, hid)     # enc Linear(in_dim, hid)
    w2, b2 = linear(k2, hid, latent)     # enc Linear(hid, latent)
    w3, b3 = linear(k3, latent, hid)     # dec Linear(latent, hid)
    w4, b4 = linear(k4, hid, in_dim)     # dec Linear(hid, in_dim)
    return (w1, b1, w2, b2, w3, b3, w4, b4)


def dae_reference(x, params):
    """f32 reference mirroring the kernel's bf16-operand / f32-accumulate dtypes."""
    w1, b1, w2, b2, w3, b3, w4, b4 = params
    hi = jax.lax.Precision.HIGHEST
    q = lambda a: a.astype(jnp.bfloat16).astype(jnp.float32)
    h = jnp.maximum(jnp.dot(q(x), q(w1), precision=hi) + b1, 0.0)
    z = jnp.maximum(jnp.dot(q(h), q(w2), precision=hi) + b2, 0.0)
    d = jnp.maximum(jnp.dot(q(z), q(w3), precision=hi) + b3, 0.0)
    return jnp.dot(q(d), q(w4), precision=hi) + b4


if __name__ == "__main__":
    key = jax.random.PRNGKey(0)

    # --- test 1: resident path (hid = max(512, in_dim//4) = 512) --------------
    B, in_dim, latent = 160, 96, 256
    kx, kp, kx2, kp2 = jax.random.split(key, 4)
    x = jax.random.normal(kx, (B, in_dim), jnp.float32)
    params = init_params(kp, in_dim, latent)
    prepped = prepare_params(params, in_dim)          # cache across calls

    out = jax.block_until_ready(dae_forward(x, prepped))
    ref = dae_reference(x, params)
    assert out.shape == (B, in_dim)
    assert jnp.allclose(out, ref, atol=2e-2, rtol=2e-2)

    # --- test 2: forced streaming path (W1 K-tiled, W4 N-tiled) ---------------
    B2, in_dim2 = 64, 384
    x2 = jax.random.normal(kx2, (B2, in_dim2), jnp.float32)
    params2 = init_params(kp2, in_dim2, latent)
    prepped2 = prepare_params(params2, in_dim2)
    out2 = jax.block_until_ready(
        dae_forward(x2, prepped2, force_stream=True, feature_tile=128))
    ref2 = dae_reference(x2, params2)
    assert out2.shape == (B2, in_dim2)
    assert jnp.allclose(out2, ref2, atol=2e-2, rtol=2e-2)

    print("KERNEL_OK")
</pallas_src>

<mosaic_0001>
module attributes {stable_mosaic.version = 11 : i64} {
  func.func @_dae_resident_kernel(%arg0: i32, %arg1: memref<80x128xf32, #tpu.memory_space<vmem>>, %arg2: memref<128x512xbf16, #tpu.memory_space<vmem>>, %arg3: memref<1x512xf32, #tpu.memory_space<vmem>>, %arg4: memref<512x256xbf16, #tpu.memory_space<vmem>>, %arg5: memref<1x256xf32, #tpu.memory_space<vmem>>, %arg6: memref<256x512xbf16, #tpu.memory_space<vmem>>, %arg7: memref<1x512xf32, #tpu.memory_space<vmem>>, %arg8: memref<512x128xbf16, #tpu.memory_space<vmem>>, %arg9: memref<1x128xf32, #tpu.memory_space<vmem>>, %arg10: memref<80x128xf32, #tpu.memory_space<vmem>>) attributes {dimension_semantics = [#tpu.dimension_semantics<parallel>], iteration_bounds = array<i64: 2>, scalar_prefetch = 0 : i64, scratch_operands = 0 : i64, tpu.core_type = #tpu.core_type<tc>, window_params = [{transform_indices = @transform_0, window_bounds = array<i64: 80, 128>}, {pipeline_mode = #tpu.pipeline_mode<synchronous>, transform_indices = @transform_1, window_bounds = array<i64: 128, 512>}, {pipeline_mode = #tpu.pipeline_mode<synchronous>, transform_indices = @transform_2, window_bounds = array<i64: 1, 512>}, {pipeline_mode = #tpu.pipeline_mode<synchronous>, transform_indices = @transform_3, window_bounds = array<i64: 512, 256>}, {pipeline_mode = #tpu.pipeline_mode<synchronous>, transform_indices = @transform_4, window_bounds = array<i64: 1, 256>}, {pipeline_mode = #tpu.pipeline_mode<synchronous>, transform_indices = @transform_5, window_bounds = array<i64: 256, 512>}, {pipeline_mode = #tpu.pipeline_mode<synchronous>, transform_indices = @transform_6, window_bounds = array<i64: 1, 512>}, {pipeline_mode = #tpu.pipeline_mode<synchronous>, transform_indices = @transform_7, window_bounds = array<i64: 512, 128>}, {pipeline_mode = #tpu.pipeline_mode<synchronous>, transform_indices = @transform_8, window_bounds = array<i64: 1, 128>}, {transform_indices = @transform_9, window_bounds = array<i64: 80, 128>}]} {
    %c0 = arith.constant 0 : index
    %c0_0 = arith.constant 0 : index
    %0 = vector.load %arg1[%c0, %c0_0] : memref<80x128xf32, #tpu.memory_space<vmem>>, vector<80x128xf32>
    %1 = arith.truncf %0 : vector<80x128xf32> to vector<80x128xbf16>
    %c0_1 = arith.constant 0 : index
    %c0_2 = arith.constant 0 : index
    %2 = vector.load %arg2[%c0_1, %c0_2] : memref<128x512xbf16, #tpu.memory_space<vmem>>, vector<128x512xbf16>
    %cst = arith.constant dense<0.000000e+00> : vector<80x512xf32>
    %3 = tpu.matmul %1, %2, %cst {dimension_numbers = #tpu.dot_dimension_numbers<[1], [0], [0], [1], [0, 0, 1, 1], [], []>} : vector<80x128xbf16>, vector<128x512xbf16>, vector<80x512xf32> -> vector<80x512xf32>
    %c0_3 = arith.constant 0 : index
    %c0_4 = arith.constant 0 : index
    %4 = vector.load %arg3[%c0_3, %c0_4] : memref<1x512xf32, #tpu.memory_space<vmem>>, vector<1x512xf32>
    %5 = vector.broadcast %4 : vector<1x512xf32> to vector<80x512xf32>
    %6 = arith.addf %3, %5 : vector<80x512xf32>
    %cst_5 = arith.constant 0.000000e+00 : f32
    %7 = vector.broadcast %cst_5 : f32 to vector<80x512xf32>
    %8 = arith.maximumf %6, %7 : vector<80x512xf32>
    %9 = arith.truncf %8 : vector<80x512xf32> to vector<80x512xbf16>
    %c0_6 = arith.constant 0 : index
    %c0_7 = arith.constant 0 : index
    %10 = vector.load %arg4[%c0_6, %c0_7] : memref<512x256xbf16, #tpu.memory_space<vmem>>, vector<512x256xbf16>
    %cst_8 = arith.constant dense<0.000000e+00> : vector<80x256xf32>
    %11 = tpu.matmul %9, %10, %cst_8 {dimension_numbers = #tpu.dot_dimension_numbers<[1], [0], [0], [1], [0, 0, 1, 1], [], []>} : vector<80x512xbf16>, vector<512x256xbf16>, vector<80x256xf32> -> vector<80x256xf32>
    %c0_9 = arith.constant 0 : index
    %c0_10 = arith.constant 0 : index
    %12 = vector.load %arg5[%c0_9, %c0_10] : memref<1x256xf32, #tpu.memory_space<vmem>>, vector<1x256xf32>
    %13 = vector.broadcast %12 : vector<1x256xf32> to vector<80x256xf32>
    %14 = arith.addf %11, %13 : vector<80x256xf32>
    %cst_11 = arith.constant 0.000000e+00 : f32
    %15 = vector.broadcast %cst_11 : f32 to vector<80x256xf32>
    %16 = arith.maximumf %14, %15 : vector<80x256xf32>
    %17 = arith.truncf %16 : vector<80x256xf32> to vector<80x256xbf16>
    %c0_12 = arith.constant 0 : index
    %c0_13 = arith.constant 0 : index
    %18 = vector.load %arg6[%c0_12, %c0_13] : memref<256x512xbf16, #tpu.memory_space<vmem>>, vector<256x512xbf16>
    %cst_14 = arith.constant dense<0.000000e+00> : vector<80x512xf32>
    %19 = tpu.matmul %17, %18, %cst_14 {dimension_numbers = #tpu.dot_dimension_numbers<[1], [0], [0], [1], [0, 0, 1, 1], [], []>} : vector<80x256xbf16>, vector<256x512xbf16>, vector<80x512xf32> -> vector<80x512xf32>
    %c0_15 = arith.constant 0 : index
    %c0_16 = arith.constant 0 : index
    %20 = vector.load %arg7[%c0_15, %c0_16] : memref<1x512xf32, #tpu.memory_space<vmem>>, vector<1x512xf32>
    %21 = vector.broadcast %20 : vector<1x512xf32> to vector<80x512xf32>
    %22 = arith.addf %19, %21 : vector<80x512xf32>
    %cst_17 = arith.constant 0.000000e+00 : f32
    %23 = vector.broadcast %cst_17 : f32 to vector<80x512xf32>
    %24 = arith.maximumf %22, %23 : vector<80x512xf32>
    %25 = arith.truncf %24 : vector<80x512xf32> to vector<80x512xbf16>
    %c0_18 = arith.constant 0 : index
    %c0_19 = arith.constant 0 : index
    %26 = vector.load %arg8[%c0_18, %c0_19] : memref<512x128xbf16, #tpu.memory_space<vmem>>, vector<512x128xbf16>
    %cst_20 = arith.constant dense<0.000000e+00> : vector<80x128xf32>
    %27 = tpu.matmul %25, %26, %cst_20 {dimension_numbers = #tpu.dot_dimension_numbers<[1], [0], [0], [1], [0, 0, 1, 1], [], []>} : vector<80x512xbf16>, vector<512x128xbf16>, vector<80x128xf32> -> vector<80x128xf32>
    %c0_21 = arith.constant 0 : index
    %c0_22 = arith.constant 0 : index
    %28 = vector.load %arg9[%c0_21, %c0_22] : memref<1x128xf32, #tpu.memory_space<vmem>>, vector<1x128xf32>
    %29 = vector.broadcast %28 : vector<1x128xf32> to vector<80x128xf32>
    %30 = arith.addf %27, %29 : vector<80x128xf32>
    %c0_23 = arith.constant 0 : index
    %c0_24 = arith.constant 0 : index
    %31 = vector.load %arg10[%c0_23, %c0_24] : memref<80x128xf32, #tpu.memory_space<vmem>>, vector<80x128xf32>
    tpu.vector_store %arg10[%c0_23, %c0_24], %30 {strides = array<i32>} : memref<80x128xf32, #tpu.memory_space<vmem>>, vector<80x128xf32>,
    return
  }
  func.func @transform_0(%arg0: i32) -> (i32, i32) {
    %c0_i32 = arith.constant 0 : i32
    %c0_i32_0 = arith.constant 0 : i32
    return %arg0, %c0_i32 : i32, i32
  }
  func.func @transform_1(%arg0: i32) -> (i32, i32) {
    %c0_i32 = arith.constant 0 : i32
    %c0_i32_0 = arith.constant 0 : i32
    %c0_i32_1 = arith.constant 0 : i32
    return %c0_i32, %c0_i32_0 : i32, i32
  }
  func.func @transform_2(%arg0: i32) -> (i32, i32) {
    %c0_i32 = arith.constant 0 : i32
    %c0_i32_0 = arith.constant 0 : i32
    %c0_i32_1 = arith.constant 0 : i32
    return %c0_i32, %c0_i32_0 : i32, i32
  }
  func.func @transform_3(%arg0: i32) -> (i32, i32) {
    %c0_i32 = arith.constant 0 : i32
    %c0_i32_0 = arith.constant 0 : i32
    %c0_i32_1 = arith.constant 0 : i32
    return %c0_i32, %c0_i32_0 : i32, i32
  }
  func.func @transform_4(%arg0: i32) -> (i32, i32) {
    %c0_i32 = arith.constant 0 : i32
    %c0_i32_0 = arith.constant 0 : i32
    %c0_i32_1 = arith.constant 0 : i32
    return %c0_i32, %c0_i32_0 : i32, i32
  }
  func.func @transform_5(%arg0: i32) -> (i32, i32) {
    %c0_i32 = arith.constant 0 : i32
    %c0_i32_0 = arith.constant 0 : i32
    %c0_i32_1 = arith.constant 0 : i32
    return %c0_i32, %c0_i32_0 : i32, i32
  }
  func.func @transform_6(%arg0: i32) -> (i32, i32) {
    %c0_i32 = arith.constant 0 : i32
    %c0_i32_0 = arith.constant 0 : i32
    %c0_i32_1 = arith.constant 0 : i32
    return %c0_i32, %c0_i32_0 : i32, i32
  }
  func.func @transform_7(%arg0: i32) -> (i32, i32) {
    %c0_i32 = arith.constant 0 : i32
    %c0_i32_0 = arith.constant 0 : i32
    %c0_i32_1 = arith.constant 0 : i32
    return %c0_i32, %c0_i32_0 : i32, i32
  }
  func.func @transform_8(%arg0: i32) -> (i32, i32) {
    %c0_i32 = arith.constant 0 : i32
    %c0_i32_0 = arith.constant 0 : i32
    %c0_i32_1 = arith.constant 0 : i32
    return %c0_i32, %c0_i32_0 : i32, i32
  }
  func.func @transform_9(%arg0: i32) -> (i32, i32) {
    %c0_i32 = arith.constant 0 : i32
    %c0_i32_0 = arith.constant 0 : i32
    return %arg0, %c0_i32 : i32, i32
  }
}

</mosaic_0001>

<llo_original>
// kernel: tpu_custom_call.1
$region0: #{tpu_custom_call.1}
  #allocation0 [shape = 'u32[]', space=smem, size = 0x4, offset = 0x4, fixed_abs, tag = 'smem constant byte address 0x4 - core index']
  #allocation1 [shape = 'u32[144,128]{1,0:T(1,128)}', space=vmem, size = 0x12000, scoped, tag = 'internal scratch']
  %s0 = inlined_call_operand.hbm [shape: f32[160,128], index: 0, kind: input, shape index: {}]
  %s1 = inlined_call_operand.hbm [shape: bf16[128,512], index: 1, kind: input, shape index: {}]
  %s2 = inlined_call_operand.vmem [shape: f32[1,512], index: 2, kind: input, shape index: {}]
  %s3 = inlined_call_operand.hbm [shape: bf16[512,256], index: 3, kind: input, shape index: {}]
  %s4 = inlined_call_operand.vmem [shape: f32[1,256], index: 4, kind: input, shape index: {}]
  %s5 = inlined_call_operand.hbm [shape: bf16[256,512], index: 5, kind: input, shape index: {}]
  %s6 = inlined_call_operand.vmem [shape: f32[1,512], index: 6, kind: input, shape index: {}]
  %s7 = inlined_call_operand.hbm [shape: bf16[512,128], index: 7, kind: input, shape index: {}]
  %s8 = inlined_call_operand.vmem [shape: f32[1,128], index: 8, kind: input, shape index: {}]
  %s9 = inlined_call_operand.hbm [shape: f32[160,128], index: 9, kind: output, shape index: {}]
  %s10 = sld [smem:[#allocation0]]
  $region89: #{tpu_custom_call.1} parent=0
    _
  %s12 = ssub.s32 1, %s10
  %s13 = scalar_select 0, %s12, %s10
  $region1: #{tpu_custom_call.1} parent=0
    #allocation2 [shape = 'u8[81920]{0}', space=vmem, size = 0x14000, scoped, tag = 'input window, operand 0']
    #allocation3 [shape = 's32[2]{0}', space=sflag, size = 0x8, scoped, tag = 'scoped memory for tpu_custom_call.1']
    #allocation4 [shape = 's32[2]{0}', space=sflag, size = 0x8, scoped, tag = 'scoped memory for tpu_custom_call.1']
    #allocation5 [shape = 'u8[131072]{0}', space=vmem, size = 0x20000, scoped, tag = 'input window, operand 1, single buffered']
    #allocation6 [shape = 's32[1]{0}', space=sflag, size = 0x4, scoped, tag = 'scoped memory for tpu_custom_call.1']
    #allocation7 [shape = 'u8[262144]{0}', space=vmem, size = 0x40000, scoped, tag = 'input window, operand 3, single buffered']
    #allocation8 [shape = 'u8[262144]{0}', space=vmem, size = 0x40000, scoped, tag = 'input window, operand 5, single buffered']
    #allocation9 [shape = 's32[1]{0}', space=sflag, size = 0x4, scoped, tag = 'scoped memory for tpu_custom_call.1']
    #allocation10 [shape = 'u8[131072]{0}', space=vmem, size = 0x20000, scoped, tag = 'input window, operand 7, single buffered']
    #allocation11 [shape = 'u8[81920]{0}', space=vmem, size = 0x14000, scoped, tag = 'output window, operand 0']
    %14 = vsyncpa [#allocation3], 0
    %s15 = scalar_lea.sflag [#allocation3], 1
    %16 = vsyncpa %s15, 0
    %17 = vsyncpa [#allocation6], 0
    %18 = vsyncpa [#allocation9], 0
    %19 = vsyncpa [#allocation4], 0
    %s20 = scalar_lea.sflag [#allocation4], 1
    %21 = vsyncpa %s20, 0
    loop: start=0, step=1, limit=4
    $region2: #{tpu_custom_call.1} parent=1 // loop_pre_header
      _
    $region3: #{tpu_custom_call.1} parent=1 // loop_header
      %s23 = sphi 0, %s27
      %p24 = scmp.ge.s32.totalorder %s23, 4
      %s33 = sphi 0, %s35
      %s36 = sphi 0, %s33
      %s37 = sphi 0, %s36
      %s53 = sphi 0, %s37
      %s57 = sphi 0, %s57
      %s59 = sphi 0, %s57
      %s60 = sphi 0, %s59
      %s74 = sphi 0, %s60
      %s78 = sphi 0, %s78
      %s80 = sphi 0, %s78
      %s81 = sphi 0, %s80
      %s95 = sphi 0, %s81
      %s99 = sphi 0, %s99
      %s101 = sphi 0, %s99
      %s102 = sphi 0, %s101
      %s116 = sphi 0, %s102
      %s120 = sphi 0, %s120
      %s122 = sphi 0, %s120
      %s123 = sphi 0, %s122
      %s137 = sphi 0, %s123
      %s141 = sphi 0, %s141
      %s143 = sphi 0, %s141
      %s144 = sphi 0, %s143
      %s158 = sphi 0, %s144
      %s162 = sphi 0, %s162
      %s164 = sphi 0, %s162
      %s165 = sphi 0, %s164
      %s179 = sphi 0, %s165
      %s183 = sphi 0, %s183
      %s185 = sphi 0, %s183
      %s186 = sphi 0, %s185
      %s200 = sphi 0, %s186
      %s204 = sphi 0, %s204
      %s206 = sphi 0, %s204
      %s207 = sphi 0, %s206
      %s221 = sphi 0, %s207
      %s227 = sphi 0, %s229
      %s230 = sphi 0, %s227
      %s231 = sphi 0, %s230
      %s247 = sphi 0, %s231
    $region4: #{tpu_custom_call.1} parent=1 // loop_header_branch
      %26 = sbr.rel (%p24) target = $region8
    $region5: #{tpu_custom_call.1} parent=1 // loop_body
      %s28 = ssub.s32 %s23, 1
      %s29 = ssub.s32 %s23, 2
      %s30 = sadd.s32 %s23, 1
      %s31 = ssub.s32 %s23, %s30
      %p32 = scmp.eq.s32.totalorder %s31, 0
      %s34 = sadd.s32 %s33, 1
      %s35 = scalar_select %p32, %s33, %s34
      %p38 = pneg %p32
      %p39 = scmp.eq.s32.totalorder %s23, 1
      %p40 = por %p38, %p39
      %p41 = scmp.ne.s32.totalorder %s33, %s36
      %p42 = scmp.eq.s32.totalorder %s23, 0
      %p43 = por %p41, %p42
      %p44 = scmp.ne.s32.totalorder %s33, %s36
      %p45 = scmp.eq.s32.totalorder %s28, 1
      %p46 = por %p44, %p45
      %p47 = scmp.ne.s32.totalorder %s36, %s37
      %p48 = scmp.eq.s32.totalorder %s28, 0
      %p49 = por %p47, %p48
      %p50 = scmp.ne.s32.totalorder %s36, %s37
      %p51 = scmp.eq.s32.totalorder %s29, 1
      %p52 = por %p50, %p51
      %p54 = scmp.ne.s32.totalorder %s37, %s53
      %p55 = scmp.eq.s32.totalorder %s29, 0
      %p56 = por %p54, %p55
      %s58 = sadd.s32 %s57, 1
      %p61 = scmp.eq.s32.totalorder %s23, 1
      %p62 = scmp.ne.s32.totalorder %s57, %s59
      %p63 = scmp.eq.s32.totalorder %s23, 0
      %p64 = por %p62, %p63
      %p65 = scmp.ne.s32.totalorder %s57, %s59
      %p66 = scmp.eq.s32.totalorder %s28, 1
      %p67 = por %p65, %p66
      %p68 = scmp.ne.s32.totalorder %s59, %s60
      %p69 = scmp.eq.s32.totalorder %s28, 0
      %p70 = por %p68, %p69
      %p71 = scmp.ne.s32.totalorder %s59, %s60
      %p72 = scmp.eq.s32.totalorder %s29, 1
      %p73 = por %p71, %p72
      %p75 = scmp.ne.s32.totalorder %s60, %s74
      %p76 = scmp.eq.s32.totalorder %s29, 0
      %p77 = por %p75, %p76
      %s79 = sadd.s32 %s78, 1
      %p82 = scmp.eq.s32.totalorder %s23, 1
      %p83 = scmp.ne.s32.totalorder %s78, %s80
      %p84 = scmp.eq.s32.totalorder %s23, 0
      %p85 = por %p83, %p84
      %p86 = scmp.ne.s32.totalorder %s78, %s80
      %p87 = scmp.eq.s32.totalorder %s28, 1
      %p88 = por %p86, %p87
      %p89 = scmp.ne.s32.totalorder %s80, %s81
      %p90 = scmp.eq.s32.totalorder %s28, 0
      %p91 = por %p89, %p90
      %p92 = scmp.ne.s32.totalorder %s80, %s81
      %p93 = scmp.eq.s32.totalorder %s29, 1
      %p94 = por %p92, %p93
      %p96 = scmp.ne.s32.totalorder %s81, %s95
      %p97 = scmp.eq.s32.totalorder %s29, 0
      %p98 = por %p96, %p97
      %s100 = sadd.s32 %s99, 1
      %p103 = scmp.eq.s32.totalorder %s23, 1
      %p104 = scmp.ne.s32.totalorder %s99, %s101
      %p105 = scmp.eq.s32.totalorder %s23, 0
      %p106 = por %p104, %p105
      %p107 = scmp.ne.s32.totalorder %s99, %s101
      %p108 = scmp.eq.s32.totalorder %s28, 1
      %p109 = por %p107, %p108
      %p110 = scmp.ne.s32.totalorder %s101, %s102
      %p111 = scmp.eq.s32.totalorder %s28, 0
      %p112 = por %p110, %p111
      %p113 = scmp.ne.s32.totalorder %s101, %s102
      %p114 = scmp.eq.s32.totalorder %s29, 1
      %p115 = por %p113, %p114
      %p117 = scmp.ne.s32.totalorder %s102, %s116
      %p118 = scmp.eq.s32.totalorder %s29, 0
      %p119 = por %p117, %p118
      %s121 = sadd.s32 %s120, 1
      %p124 = scmp.eq.s32.totalorder %s23, 1
      %p125 = scmp.ne.s32.totalorder %s120, %s122
      %p126 = scmp.eq.s32.totalorder %s23, 0
      %p127 = por %p125, %p126
      %p128 = scmp.ne.s32.totalorder %s120, %s122
      %p129 = scmp.eq.s32.totalorder %s28, 1
      %p130 = por %p128, %p129
      %p131 = scmp.ne.s32.totalorder %s122, %s123
      %p132 = scmp.eq.s32.totalorder %s28, 0
      %p133 = por %p131, %p132
      %p134 = scmp.ne.s32.totalorder %s122, %s123
      %p135 = scmp.eq.s32.totalorder %s29, 1
      %p136 = por %p134, %p135
      %p138 = scmp.ne.s32.totalorder %s123, %s137
      %p139 = scmp.eq.s32.totalorder %s29, 0
      %p140 = por %p138, %p139
      %s142 = sadd.s32 %s141, 1
      %p145 = scmp.eq.s32.totalorder %s23, 1
      %p146 = scmp.ne.s32.totalorder %s141, %s143
      %p147 = scmp.eq.s32.totalorder %s23, 0
      %p148 = por %p146, %p147
      %p149 = scmp.ne.s32.totalorder %s141, %s143
      %p150 = scmp.eq.s32.totalorder %s28, 1
      %p151 = por %p149, %p150
      %p152 = scmp.ne.s32.totalorder %s143, %s144
      %p153 = scmp.eq.s32.totalorder %s28, 0
      %p154 = por %p152, %p153
      %p155 = scmp.ne.s32.totalorder %s143, %s144
      %p156 = scmp.eq.s32.totalorder %s29, 1
      %p157 = por %p155, %p156
      %p159 = scmp.ne.s32.totalorder %s144, %s158
      %p160 = scmp.eq.s32.totalorder %s29, 0
      %p161 = por %p159, %p160
      %s163 = sadd.s32 %s162, 1
      %p166 = scmp.eq.s32.totalorder %s23, 1
      %p167 = scmp.ne.s32.totalorder %s162, %s164
      %p168 = scmp.eq.s32.totalorder %s23, 0
      %p169 = por %p167, %p168
      %p170 = scmp.ne.s32.totalorder %s162, %s164
      %p171 = scmp.eq.s32.totalorder %s28, 1
      %p172 = por %p170, %p171
      %p173 = scmp.ne.s32.totalorder %s164, %s165
      %p174 = scmp.eq.s32.totalorder %s28, 0
      %p175 = por %p173, %p174
      %p176 = scmp.ne.s32.totalorder %s164, %s165
      %p177 = scmp.eq.s32.totalorder %s29, 1
      %p178 = por %p176, %p177
      %p180 = scmp.ne.s32.totalorder %s165, %s179
      %p181 = scmp.eq.s32.totalorder %s29, 0
      %p182 = por %p180, %p181
      %s184 = sadd.s32 %s183, 1
      %p187 = scmp.eq.s32.totalorder %s23, 1
      %p188 = scmp.ne.s32.totalorder %s183, %s185
      %p189 = scmp.eq.s32.totalorder %s23, 0
      %p190 = por %p188, %p189
      %p191 = scmp.ne.s32.totalorder %s183, %s185
      %p192 = scmp.eq.s32.totalorder %s28, 1
      %p193 = por %p191, %p192
      %p194 = scmp.ne.s32.totalorder %s185, %s186
      %p195 = scmp.eq.s32.totalorder %s28, 0
      %p196 = por %p194, %p195
      %p197 = scmp.ne.s32.totalorder %s185, %s186
      %p198 = scmp.eq.s32.totalorder %s29, 1
      %p199 = por %p197, %p198
      %p201 = scmp.ne.s32.totalorder %s186, %s200
      %p202 = scmp.eq.s32.totalorder %s29, 0
      %p203 = por %p201, %p202
      %s205 = sadd.s32 %s204, 1
      %p208 = scmp.eq.s32.totalorder %s23, 1
      %p209 = scmp.ne.s32.totalorder %s204, %s206
      %p210 = scmp.eq.s32.totalorder %s23, 0
      %p211 = por %p209, %p210
      %p212 = scmp.ne.s32.totalorder %s204, %s206
      %p213 = scmp.eq.s32.totalorder %s28, 1
      %p214 = por %p212, %p213
      %p215 = scmp.ne.s32.totalorder %s206, %s207
      %p216 = scmp.eq.s32.totalorder %s28, 0
      %p217 = por %p215, %p216
      %p218 = scmp.ne.s32.totalorder %s206, %s207
      %p219 = scmp.eq.s32.totalorder %s29, 1
      %p220 = por %p218, %p219
      %p222 = scmp.ne.s32.totalorder %s207, %s221
      %p223 = scmp.eq.s32.totalorder %s29, 0
      %p224 = por %p222, %p223
      %s225 = ssub.s32 %s23, %s30
      %p226 = scmp.eq.s32.totalorder %s225, 0
      %s228 = sadd.s32 %s227, 1
      %s229 = scalar_select %p226, %s227, %s228
      %p232 = pneg %p226
      %p233 = scmp.eq.s32.totalorder %s23, 1
      %p234 = por %p232, %p233
      %p235 = scmp.ne.s32.totalorder %s227, %s230
      %p236 = scmp.eq.s32.totalorder %s23, 0
      %p237 = por %p235, %p236
      %p238 = scmp.ne.s32.totalorder %s227, %s230
      %p239 = scmp.eq.s32.totalorder %s28, 1
      %p240 = por %p238, %p239
      %p241 = scmp.ne.s32.totalorder %s230, %s231
      %p242 = scmp.eq.s32.totalorder %s28, 0
      %p243 = por %p241, %p242
      %p244 = scmp.ne.s32.totalorder %s230, %s231
      %p245 = scmp.eq.s32.totalorder %s29, 1
      %p246 = por %p244, %p245
      %p248 = scmp.ne.s32.totalorder %s231, %s247
      %p249 = scmp.eq.s32.totalorder %s29, 0
      %p250 = por %p248, %p249
      %p251 = scmp.le.s32.totalorder 1, %s23
      %p252 = scmp.lt.s32.totalorder %s23, 3
      %p253 = pnand %p251, %p252
      %p254 = pneg %p253
      // Predicated region
      $region9: #{tpu_custom_call.1} parent=5 // pred_check
        _
      $region10: #{tpu_custom_call.1} parent=5 // pred_check_branch
        %256 = sbr.rel (%p253) target = $region12
      $region11: #{tpu_custom_call.1} parent=5 // pred_region
        %s257 = ssub.s32 %s23, 1
        // Predicated region
        $region13: #{tpu_custom_call.1} parent=11 // pred_check
          %p258 = pneg %p70
        $region14: #{tpu_custom_call.1} parent=11 // pred_check_branch
          %260 = sbr.rel (%p258) target = $region16
        $region15: #{tpu_custom_call.1} parent=11 // pred_region
          %s262 = ssub.s32 4096, 4096
          %263 = vsyncadd [#allocation6], %s262
          %s264 = sshll.u32 [#allocation5], 4
          %s265 = int_to_ptr.vmem [resolvable:$true] %s264
          %270 = dma.hbm_to_vmem [thread:$0]  %s1, 4096, %s265, [#allocation6], 256, 256, 16
        $region16: #{tpu_custom_call.1} parent=11 // pred_fallthru
          _
        // Predicated region
        $region17: #{tpu_custom_call.1} parent=11 // pred_check
          %p271 = pneg %p91
        $region18: #{tpu_custom_call.1} parent=11 // pred_check_branch
          %273 = sbr.rel (%p271) target = $region20
        $region19: #{tpu_custom_call.1} parent=11 // pred_region
          _
        $region20: #{tpu_custom_call.1} parent=11 // pred_fallthru
          _
        // Predicated region
        $region21: #{tpu_custom_call.1} parent=11 // pred_check
          %p274 = pneg %p112
        $region22: #{tpu_custom_call.1} parent=11 // pred_check_branch
          %276 = sbr.rel (%p274) target = $region24
        $region23: #{tpu_custom_call.1} parent=11 // pred_region
          %s278 = ssub.s32 8192, 8192
          %279 = vsyncadd [#allocation6], %s278
          %s280 = sshll.u32 [#allocation7], 4
          %s281 = int_to_ptr.vmem [resolvable:$true] %s280
          %286 = dma.hbm_to_vmem [thread:$0]  %s3, 8192, %s281, [#allocation6], 128, 128, 8
        $region24: #{tpu_custom_call.1} parent=11 // pred_fallthru
          _
        // Predicated region
        $region25: #{tpu_custom_call.1} parent=11 // pred_check
          %p287 = pneg %p133
        $region26: #{tpu_custom_call.1} parent=11 // pred_check_branch
          %289 = sbr.rel (%p287) target = $region28
        $region27: #{tpu_custom_call.1} parent=11 // pred_region
          _
        $region28: #{tpu_custom_call.1} parent=11 // pred_fallthru
          _
        // Predicated region
        $region29: #{tpu_custom_call.1} parent=11 // pred_check
          %p290 = pneg %p154
        $region30: #{tpu_custom_call.1} parent=11 // pred_check_branch
          %292 = sbr.rel (%p290) target = $region32
        $region31: #{tpu_custom_call.1} parent=11 // pred_region
          %s294 = ssub.s32 8192, 8192
          %295 = vsyncadd [#allocation9], %s294
          %s296 = sshll.u32 [#allocation8], 4
          %s297 = int_to_ptr.vmem [resolvable:$true] %s296
          %302 = dma.hbm_to_vmem [thread:$0]  %s5, 8192, %s297, [#allocation9], 256, 256, 16
        $region32: #{tpu_custom_call.1} parent=11 // pred_fallthru
          _
        // Predicated region
        $region33: #{tpu_custom_call.1} parent=11 // pred_check
          %p303 = pneg %p175
        $region34: #{tpu_custom_call.1} parent=11 // pred_check_branch
          %305 = sbr.rel (%p303) target = $region36
        $region35: #{tpu_custom_call.1} parent=11 // pred_region
          _
        $region36: #{tpu_custom_call.1} parent=11 // pred_fallthru
          _
        // Predicated region
        $region37: #{tpu_custom_call.1} parent=11 // pred_check
          %p306 = pneg %p196
        $region38: #{tpu_custom_call.1} parent=11 // pred_check_branch
          %308 = sbr.rel (%p306) target = $region40
        $region39: #{tpu_custom_call.1} parent=11 // pred_region
          %s310 = ssub.s32 4096, 4096
          %311 = vsyncadd [#allocation9], %s310
          %s312 = sshll.u32 [#allocation10], 4
          %s313 = int_to_ptr.vmem [resolvable:$true] %s312
          %318 = dma.hbm_to_vmem [thread:$0]  %s7, 4096, %s313, [#allocation9], 64, 64, 4
        $region40: #{tpu_custom_call.1} parent=11 // pred_fallthru
          _
        // Predicated region
        $region41: #{tpu_custom_call.1} parent=11 // pred_check
          %p319 = pneg %p217
        $region42: #{tpu_custom_call.1} parent=11 // pred_check_branch
          %321 = sbr.rel (%p319) target = $region44
        $region43: #{tpu_custom_call.1} parent=11 // pred_region
          _
        $region44: #{tpu_custom_call.1} parent=11 // pred_fallthru
          _
      $region12: #{tpu_custom_call.1} parent=5 // pred_fallthru
        _
      %p322 = scmp.lt.s32.totalorder %s23, 2
      // Predicated region
      $region45: #{tpu_custom_call.1} parent=5 // pred_check
        %p323 = pneg %p322
      $region46: #{tpu_custom_call.1} parent=5 // pred_check_branch
        %325 = sbr.rel (%p323) target = $region48
      $region47: #{tpu_custom_call.1} parent=5 // pred_region
        // Predicated region
        $region49: #{tpu_custom_call.1} parent=47 // pred_check
          %p326 = pneg %p43
        $region50: #{tpu_custom_call.1} parent=47 // pred_check_branch
          %328 = sbr.rel (%p326) target = $region52
        $region51: #{tpu_custom_call.1} parent=47 // pred_region
          %s329 = sand.u32 %s33, 1
          %s330 = scalar_lea.sflag [#allocation3], %s329
          %s331 = sand.u32 %s33, 1
          %s332 = smul.addr %s331, 80
          %s333 = scalar_lea.vmem [#allocation2], %s332
          %s334 = smul.u32 10, %s23
          %s336 = ssub.s32 1280, 1280
          %337 = vsyncadd %s330, %s336
          %s338 = smul.addr %s334, 128
          %s339 = scalar_lea.hbm %s0, %s338
          %s340 = sshll.u32 %s333, 4
          %s341 = int_to_ptr.vmem [resolvable:$true] %s340
          %346 = dma.hbm_to_vmem [thread:$0]  %s339, 1280, %s341, %s330, 128, 128, 8
        $region52: #{tpu_custom_call.1} parent=47 // pred_fallthru
          _
      $region48: #{tpu_custom_call.1} parent=5 // pred_fallthru
        _
      %p347 = scmp.le.s32.totalorder 1, %s23
      %p348 = scmp.lt.s32.totalorder %s23, 3
      %p349 = pnand %p347, %p348
      %p350 = pneg %p349
      // Predicated region
      $region53: #{tpu_custom_call.1} parent=5 // pred_check
        _
      $region54: #{tpu_custom_call.1} parent=5 // pred_check_branch
        %352 = sbr.rel (%p349) target = $region56
      $region55: #{tpu_custom_call.1} parent=5 // pred_region
        %s353 = ssub.s32 %s23, 1
        %s354 = sand.u32 %s36, 1
        %s355 = scalar_lea.sflag [#allocation3], %s354
        %s356 = sand.u32 %s36, 1
        %s357 = smul.addr %s356, 80
        %s358 = scalar_lea.vmem [#allocation2], %s357
        // Predicated region
        $region57: #{tpu_custom_call.1} parent=55 // pred_check
          %p359 = pneg %p49
        $region58: #{tpu_custom_call.1} parent=55 // pred_check_branch
          %361 = sbr.rel (%p359) target = $region60
        $region59: #{tpu_custom_call.1} parent=55 // pred_region
          %362 = dma.done %s355, 1280
        $region60: #{tpu_custom_call.1} parent=55 // pred_fallthru
          _
        // Predicated region
        $region61: #{tpu_custom_call.1} parent=55 // pred_check
          %p363 = pneg %p70
        $region62: #{tpu_custom_call.1} parent=55 // pred_check_branch
          %365 = sbr.rel (%p363) target = $region64
        $region63: #{tpu_custom_call.1} parent=55 // pred_region
          %366 = dma.done [#allocation6], 4096
        $region64: #{tpu_custom_call.1} parent=55 // pred_fallthru
          _
        // Predicated region
        $region65: #{tpu_custom_call.1} parent=55 // pred_check
          %p367 = pneg %p112
        $region66: #{tpu_custom_call.1} parent=55 // pred_check_branch
          %369 = sbr.rel (%p367) target = $region68
        $region67: #{tpu_custom_call.1} parent=55 // pred_region
          %370 = dma.done [#allocation6], 8192
        $region68: #{tpu_custom_call.1} parent=55 // pred_fallthru
          _
        // Predicated region
        $region69: #{tpu_custom_call.1} parent=55 // pred_check
          %p371 = pneg %p154
        $region70: #{tpu_custom_call.1} parent=55 // pred_check_branch
          %373 = sbr.rel (%p371) target = $region72
        $region71: #{tpu_custom_call.1} parent=55 // pred_region
          %374 = dma.done [#allocation9], 8192
        $region72: #{tpu_custom_call.1} parent=55 // pred_fallthru
          _
        // Predicated region
        $region73: #{tpu_custom_call.1} parent=55 // pred_check
          %p375 = pneg %p196
        $region74: #{tpu_custom_call.1} parent=55 // pred_check_branch
          %377 = sbr.rel (%p375) target = $region76
        $region75: #{tpu_custom_call.1} parent=55 // pred_region
          %378 = dma.done [#allocation9], 4096
        $region76: #{tpu_custom_call.1} parent=55 // pred_fallthru
          _
        %s379 = sand.u32 %s36, 1
        %s380 = scalar_lea.sflag [#allocation3], %s379
        %s381 = sand.u32 %s36, 1
        %s382 = smul.addr %s381, 80
        %s383 = scalar_lea.vmem [#allocation2], %s382
        %p384 = pneg %p49
        %p385 = pneg %p46
        %p386 = pneg %p70
        %p387 = pneg %p67
        %p388 = pneg %p91
        %p389 = pneg %p88
        %p390 = pneg %p112
        %p391 = pneg %p109
        %p392 = pneg %p133
        %p393 = pneg %p130
        %p394 = pneg %p154
        %p395 = pneg %p151
        %p396 = pneg %p175
        %p397 = pneg %p172
        %p398 = pneg %p196
        %p399 = pneg %p193
        %p400 = pneg %p217
        %p401 = pneg %p214
        %p402 = pneg %p243
        %p403 = pneg %p240
        %s404 = sand.u32 %s230, 1
        %s405 = scalar_lea.sflag [#allocation4], %s404
        %s406 = sand.u32 %s230, 1
        %s407 = smul.addr %s406, 80
        %s408 = scalar_lea.vmem [#allocation11], %s407
        %s409 = smul.u32 10, %s28
        %s410 = smul.u32 10, %s28
        %v412 = vld [vmem:[%s358] sm:$0xff]
        %v413 = vld [vmem:[%s358 + $0x8] sm:$0xff]
        %v414 = vld [vmem:[%s358 + $0x10] sm:$0xff]
        %v415 = vld [vmem:[%s358 + $0x18] sm:$0xff]
        %v416 = vld [vmem:[%s358 + $0x20] sm:$0xff]
        %v417 = vld [vmem:[%s358 + $0x28] sm:$0xff]
        %v418 = vld [vmem:[%s358 + $0x30] sm:$0xff]
        %v419 = vld [vmem:[%s358 + $0x38] sm:$0xff]
        %v420 = vld [vmem:[%s358 + $0x40] sm:$0xff]
        %v421 = vld [vmem:[%s358 + $0x48] sm:$0xff]
        %v422 = vpack.c.bf16 %v413, %v412
        %v423 = vpack.c.bf16 %v415, %v414
        %v424 = vpack.c.bf16 %v417, %v416
        %v425 = vpack.c.bf16 %v419, %v418
        %v426 = vpack.c.bf16 %v421, %v420
        %v427 = vld [vmem:[#allocation5] sm:$0xff]
        %v428 = vld [vmem:[#allocation5 + $0x8] sm:$0xff]
        %v429 = vld [vmem:[#allocation5 + $0x10] sm:$0xff]
        %v430 = vld [vmem:[#allocation5 + $0x18] sm:$0xff]
        %v431 = vld [vmem:[#allocation5 + $0x20] sm:$0xff]
        %v432 = vld [vmem:[#allocation5 + $0x28] sm:$0xff]
        %v433 = vld [vmem:[#allocation5 + $0x30] sm:$0xff]
        %v434 = vld [vmem:[#allocation5 + $0x38] sm:$0xff]
        %v435 = vld [vmem:[#allocation5 + $0x40] sm:$0xff]
        %v436 = vld [vmem:[#allocation5 + $0x48] sm:$0xff]
        %v437 = vld [vmem:[#allocation5 + $0x50] sm:$0xff]
        %v438 = vld [vmem:[#allocation5 + $0x58] sm:$0xff]
        %v439 = vld [vmem:[#allocation5 + $0x60] sm:$0xff]
        %v440 = vld [vmem:[#allocation5 + $0x68] sm:$0xff]
        %v441 = vld [vmem:[#allocation5 + $0x70] sm:$0xff]
        %v442 = vld [vmem:[#allocation5 + $0x78] sm:$0xff]
        %v443 = vld [vmem:[#allocation5 + $0x80] sm:$0xff]
        %v444 = vld [vmem:[#allocation5 + $0x88] sm:$0xff]
        %v445 = vld [vmem:[#allocation5 + $0x90] sm:$0xff]
        %v446 = vld [vmem:[#allocation5 + $0x98] sm:$0xff]
        %v447 = vld [vmem:[#allocation5 + $0xa0] sm:$0xff]
        %v448 = vld [vmem:[#allocation5 + $0xa8] sm:$0xff]
        %v449 = vld [vmem:[#allocation5 + $0xb0] sm:$0xff]
        %v450 = vld [vmem:[#allocation5 + $0xb8] sm:$0xff]
        %v451 = vld [vmem:[#allocation5 + $0xc0] sm:$0xff]
        %v452 = vld [vmem:[#allocation5 + $0xc8] sm:$0xff]
        %v453 = vld [vmem:[#allocation5 + $0xd0] sm:$0xff]
        %v454 = vld [vmem:[#allocation5 + $0xd8] sm:$0xff]
        %v455 = vld [vmem:[#allocation5 + $0xe0] sm:$0xff]
        %v456 = vld [vmem:[#allocation5 + $0xe8] sm:$0xff]
        %v457 = vld [vmem:[#allocation5 + $0xf0] sm:$0xff]
        %v458 = vld [vmem:[#allocation5 + $0xf8] sm:$0xff]
        %v459 = vld [vmem:[%s2] sm:$0xf]
        %v461 = vlaneseq
        %v462 = vshrl.u32 %v461, 7
        %v463 = vsub.s32 0, %v462
        %v464 = vrot.slane %v459, %v463
        %v465 = vlaneseq
        %v466 = vshrl.u32 %v465, 7
        %v467 = vsub.s32 1, %v466
        %v468 = vrot.slane %v459, %v467
        %v469 = vlaneseq
        %v470 = vshrl.u32 %v469, 7
        %v471 = vsub.s32 2, %v470
        %v472 = vrot.slane %v459, %v471
        %v473 = vlaneseq
        %v474 = vshrl.u32 %v473, 7
        %v475 = vsub.s32 3, %v474
        %v476 = vrot.slane %v459, %v475
        %v513 = vunpack.c.l.b16 %v427
        %v514 = vunpack.c.h.b16 %v427
        %v515 = vunpack.c.l.b16 %v428
        %v516 = vunpack.c.h.b16 %v428
        %v517 = vunpack.c.l.b16 %v429
        %v518 = vunpack.c.h.b16 %v429
        %v519 = vunpack.c.l.b16 %v430
        %v520 = vunpack.c.h.b16 %v430
        %v521 = vunpack.c.l.b16 %v431
        %v522 = vunpack.c.h.b16 %v431
        %v523 = vunpack.c.l.b16 %v432
        %v524 = vunpack.c.h.b16 %v432
        %v525 = vunpack.c.l.b16 %v433
        %v526 = vunpack.c.h.b16 %v433
        %v527 = vunpack.c.l.b16 %v434
        %v528 = vunpack.c.h.b16 %v434
        %v529 = vunpack.c.l.b16 %v435
        %v530 = vunpack.c.h.b16 %v435
        %v531 = vunpack.c.l.b16 %v436
        %v532 = vunpack.c.h.b16 %v436
        %v533 = vunpack.c.l.b16 %v437
        %v534 = vunpack.c.h.b16 %v437
        %v535 = vunpack.c.l.b16 %v438
        %v536 = vunpack.c.h.b16 %v438
        %v537 = vunpack.c.l.b16 %v439
        %v538 = vunpack.c.h.b16 %v439
        %v539 = vunpack.c.l.b16 %v440
        %v540 = vunpack.c.h.b16 %v440
        %v541 = vunpack.c.l.b16 %v441
        %v542 = vunpack.c.h.b16 %v441
        %v543 = vunpack.c.l.b16 %v442
        %v544 = vunpack.c.h.b16 %v442
        %v545 = vunpack.c.l.b16 %v443
        %v546 = vunpack.c.h.b16 %v443
        %v547 = vunpack.c.l.b16 %v444
        %v548 = vunpack.c.h.b16 %v444
        %v549 = vunpack.c.l.b16 %v445
        %v550 = vunpack.c.h.b16 %v445
        %v551 = vunpack.c.l.b16 %v446
        %v552 = vunpack.c.h.b16 %v446
        %v553 = vunpack.c.l.b16 %v447
        %v554 = vunpack.c.h.b16 %v447
        %v555 = vunpack.c.l.b16 %v448
        %v556 = vunpack.c.h.b16 %v448
        %v557 = vunpack.c.l.b16 %v449
        %v558 = vunpack.c.h.b16 %v449
        %v559 = vunpack.c.l.b16 %v450
        %v560 = vunpack.c.h.b16 %v450
        %v561 = vunpack.c.l.b16 %v451
        %v562 = vunpack.c.h.b16 %v451
        %v563 = vunpack.c.l.b16 %v452
        %v564 = vunpack.c.h.b16 %v452
        %v565 = vunpack.c.l.b16 %v453
        %v566 = vunpack.c.h.b16 %v453
        %v567 = vunpack.c.l.b16 %v454
        %v568 = vunpack.c.h.b16 %v454
        %v569 = vunpack.c.l.b16 %v455
        %v570 = vunpack.c.h.b16 %v455
        %v571 = vunpack.c.l.b16 %v456
        %v572 = vunpack.c.h.b16 %v456
        %v573 = vunpack.c.l.b16 %v457
        %v574 = vunpack.c.h.b16 %v457
        %v575 = vunpack.c.l.b16 %v458
        %v576 = vunpack.c.h.b16 %v458
        %v577 = vpack.c.b16 %v517, %v513
        %v578 = vpack.c.b16 %v518, %v514
        %v579 = vpack.c.b16 %v519, %v515
        %v580 = vpack.c.b16 %v520, %v516
        %v581 = vpack.c.b16 %v525, %v521
        %v582 = vpack.c.b16 %v526, %v522
        %v583 = vpack.c.b16 %v527, %v523
        %v584 = vpack.c.b16 %v528, %v524
        %v585 = vpack.c.b16 %v533, %v529
        %v586 = vpack.c.b16 %v534, %v530
        %v587 = vpack.c.b16 %v535, %v531
        %v588 = vpack.c.b16 %v536, %v532
        %v589 = vpack.c.b16 %v541, %v537
        %v590 = vpack.c.b16 %v542, %v538
        %v591 = vpack.c.b16 %v543, %v539
        %v592 = vpack.c.b16 %v544, %v540
        %v593 = vpack.c.b16 %v549, %v545
        %v594 = vpack.c.b16 %v550, %v546
        %v595 = vpack.c.b16 %v551, %v547
        %v596 = vpack.c.b16 %v552, %v548
        %v597 = vpack.c.b16 %v557, %v553
        %v598 = vpack.c.b16 %v558, %v554
        %v599 = vpack.c.b16 %v559, %v555
        %v600 = vpack.c.b16 %v560, %v556
        %v601 = vpack.c.b16 %v565, %v561
        %v602 = vpack.c.b16 %v566, %v562
        %v603 = vpack.c.b16 %v567, %v563
        %v604 = vpack.c.b16 %v568, %v564
        %v605 = vpack.c.b16 %v573, %v569
        %v606 = vpack.c.b16 %v574, %v570
        %v607 = vpack.c.b16 %v575, %v571
        %v608 = vpack.c.b16 %v576, %v572
        %641 = vmatprep.subr.bf16.mxu0 %v578
        %642 = vmatpush1.bf16.msra.mxu0 %v577
        %643 = vmatprep.subr.bf16.mxu0 %v582
        %644 = vmatpush1.bf16.msra.mxu0 %v581
        %645 = vmatprep.subr.bf16.mxu0 %v586
        %646 = vmatpush1.bf16.msra.mxu0 %v585
        %647 = vmatprep.subr.bf16.mxu0 %v590
        %648 = vmatpush1.bf16.msra.mxu0 %v589
        %649 = vmatprep.subr.bf16.mxu0 %v594
        %650 = vmatpush1.bf16.msra.mxu0 %v593
        %651 = vmatprep.subr.bf16.mxu0 %v598
        %652 = vmatpush1.bf16.msra.mxu0 %v597
        %653 = vmatprep.subr.bf16.mxu0 %v602
        %654 = vmatpush1.bf16.msra.mxu0 %v601
        %655 = vmatprep.subr.bf16.mxu0 %v606
        %656 = vmatpush1.bf16.msra.mxu0 %v605
        %657 = vmatprep.subr.bf16.mxu0 0
        %658 = vmatpush1.bf16.msra.mxu0 0
        %659 = vmatprep.subr.bf16.mxu0 0
        %660 = vmatpush1.bf16.msra.mxu0 0
        %661 = vmatprep.subr.bf16.mxu0 0
        %662 = vmatpush1.bf16.msra.mxu0 0
        %663 = vmatprep.subr.bf16.mxu0 0
        %664 = vmatpush1.bf16.msra.mxu0 0
        %665 = vmatprep.subr.bf16.mxu0 0
        %666 = vmatpush1.bf16.msra.mxu0 0
        %667 = vmatprep.subr.bf16.mxu0 0
        %668 = vmatpush1.bf16.msra.mxu0 0
        %669 = vmatprep.subr.bf16.mxu0 0
        %670 = vmatpush1.bf16.msra.mxu0 0
        %671 = vmatprep.subr.bf16.mxu0 0
        %672 = vmatpush1.bf16.msra.mxu0 0
        %673 = vmatprep.mubr.bf16.mxu0 0
        %674 = vmatmul.mubr.bf16.gmra.mrb[0].mxu0 %v422
        %v675 = vpop.f32.mrb[0].mxu0
        %v676 = vadd.f32 %v464, %v675
        %v677 = vpop.f32.mrb[0].mxu0
        %v678 = vadd.f32 %v468, %v677
        %v679 = vpop.f32.mrb[0].mxu0
        %v680 = vadd.f32 %v464, %v679
        %v681 = vpop.f32.mrb[0].mxu0
        %v682 = vadd.f32 %v468, %v681
        %683 = vmatprep.mubr.bf16.mxu0 0
        %684 = vmatmul.mubr.bf16.gmra.mrb[0].mxu0 %v423
        %v685 = vpop.f32.mrb[0].mxu0
        %v686 = vadd.f32 %v464, %v685
        %v687 = vpop.f32.mrb[0].mxu0
        %v688 = vadd.f32 %v468, %v687
        %v689 = vpop.f32.mrb[0].mxu0
        %v690 = vadd.f32 %v464, %v689
        %v691 = vpop.f32.mrb[0].mxu0
        %v692 = vadd.f32 %v468, %v691
        %693 = vmatprep.mubr.bf16.mxu0 0
        %694 = vmatmul.mubr.bf16.gmra.mrb[0].mxu0 %v424
        %v695 = vpop.f32.mrb[0].mxu0
        %v696 = vadd.f32 %v464, %v695
        %v697 = vpop.f32.mrb[0].mxu0
        %v698 = vadd.f32 %v468, %v697
        %v699 = vpop.f32.mrb[0].mxu0
        %v700 = vadd.f32 %v464, %v699
        %v701 = vpop.f32.mrb[0].mxu0
        %v702 = vadd.f32 %v468, %v701
        %703 = vmatprep.mubr.bf16.mxu0 0
        %704 = vmatmul.mubr.bf16.gmra.mrb[0].mxu0 %v425
        %v705 = vpop.f32.mrb[0].mxu0
        %v706 = vadd.f32 %v464, %v705
        %v707 = vpop.f32.mrb[0].mxu0
        %v708 = vadd.f32 %v468, %v707
        %v709 = vpop.f32.mrb[0].mxu0
        %v710 = vadd.f32 %v464, %v709
        %v711 = vpop.f32.mrb[0].mxu0
        %v712 = vadd.f32 %v468, %v711
        %713 = vmatprep.mubr.bf16.mxu0 0
        %714 = vmatmul.mubr.bf16.gmra.mrb[0].mxu0 %v426
        %v715 = vpop.f32.mrb[0].mxu0
        %v716 = vadd.f32 %v464, %v715
        %v717 = vpop.f32.mrb[0].mxu0
        %v718 = vadd.f32 %v468, %v717
        %v719 = vpop.f32.mrb[0].mxu0
        %v720 = vadd.f32 %v464, %v719
        %v721 = vpop.f32.mrb[0].mxu0
        %v722 = vadd.f32 %v468, %v721
        %723 = vdwg.mxu0
        %724 = vmatprep.subr.bf16.mxu0 %v580
        %725 = vmatpush1.bf16.msra.mxu0 %v579
        %726 = vmatprep.subr.bf16.mxu0 %v584
        %727 = vmatpush1.bf16.msra.mxu0 %v583
        %728 = vmatprep.subr.bf16.mxu0 %v588
        %729 = vmatpush1.bf16.msra.mxu0 %v587
        %730 = vmatprep.subr.bf16.mxu0 %v592
        %731 = vmatpush1.bf16.msra.mxu0 %v591
        %732 = vmatprep.subr.bf16.mxu0 %v596
        %733 = vmatpush1.bf16.msra.mxu0 %v595
        %734 = vmatprep.subr.bf16.mxu0 %v600
        %735 = vmatpush1.bf16.msra.mxu0 %v599
        %736 = vmatprep.subr.bf16.mxu0 %v604
        %737 = vmatpush1.bf16.msra.mxu0 %v603
        %738 = vmatprep.subr.bf16.mxu0 %v608
        %739 = vmatpush1.bf16.msra.mxu0 %v607
        %740 = vmatprep.subr.bf16.mxu0 0
        %741 = vmatpush1.bf16.msra.mxu0 0
        %742 = vmatprep.subr.bf16.mxu0 0
        %743 = vmatpush1.bf16.msra.mxu0 0
        %744 = vmatprep.subr.bf16.mxu0 0
        %745 = vmatpush1.bf16.msra.mxu0 0
        %746 = vmatprep.subr.bf16.mxu0 0
        %747 = vmatpush1.bf16.msra.mxu0 0
        %748 = vmatprep.subr.bf16.mxu0 0
        %749 = vmatpush1.bf16.msra.mxu0 0
        %750 = vmatprep.subr.bf16.mxu0 0
        %751 = vmatpush1.bf16.msra.mxu0 0
        %752 = vmatprep.subr.bf16.mxu0 0
        %753 = vmatpush1.bf16.msra.mxu0 0
        %754 = vmatprep.subr.bf16.mxu0 0
        %755 = vmatpush1.bf16.msra.mxu0 0
        %756 = vmatprep.mubr.bf16.mxu0 0
        %757 = vmatmul.mubr.bf16.gmra.mrb[0].mxu0 %v422
        %v758 = vpop.f32.mrb[0].mxu0
        %v759 = vadd.f32 %v472, %v758
        %v760 = vpop.f32.mrb[0].mxu0
        %v761 = vadd.f32 %v476, %v760
        %v762 = vpop.f32.mrb[0].mxu0
        %v763 = vadd.f32 %v472, %v762
        %v764 = vpop.f32.mrb[0].mxu0
        %v765 = vadd.f32 %v476, %v764
        %766 = vmatprep.mubr.bf16.mxu0 0
        %767 = vmatmul.mubr.bf16.gmra.mrb[0].mxu0 %v423
        %v768 = vpop.f32.mrb[0].mxu0
        %v769 = vadd.f32 %v472, %v768
        %v770 = vpop.f32.mrb[0].mxu0
        %v771 = vadd.f32 %v476, %v770
        %v772 = vpop.f32.mrb[0].mxu0
        %v773 = vadd.f32 %v472, %v772
        %v774 = vpop.f32.mrb[0].mxu0
        %v775 = vadd.f32 %v476, %v774
        %776 = vmatprep.mubr.bf16.mxu0 0
        %777 = vmatmul.mubr.bf16.gmra.mrb[0].mxu0 %v424
        %v778 = vpop.f32.mrb[0].mxu0
        %v779 = vadd.f32 %v472, %v778
        %v780 = vpop.f32.mrb[0].mxu0
        %v781 = vadd.f32 %v476, %v780
        %v782 = vpop.f32.mrb[0].mxu0
        %v783 = vadd.f32 %v472, %v782
        %v784 = vpop.f32.mrb[0].mxu0
        %v785 = vadd.f32 %v476, %v784
        %786 = vmatprep.mubr.bf16.mxu0 0
        %787 = vmatmul.mubr.bf16.gmra.mrb[0].mxu0 %v425
        %v788 = vpop.f32.mrb[0].mxu0
        %v789 = vadd.f32 %v472, %v788
        %v790 = vpop.f32.mrb[0].mxu0
        %v791 = vadd.f32 %v476, %v790
        %v792 = vpop.f32.mrb[0].mxu0
        %v793 = vadd.f32 %v472, %v792
        %v794 = vpop.f32.mrb[0].mxu0
        %v795 = vadd.f32 %v476, %v794
        %796 = vmatprep.mubr.bf16.mxu0 0
        %797 = vmatmul.mubr.bf16.gmra.mrb[0].mxu0 %v426
        %v798 = vpop.f32.mrb[0].mxu0
        %v799 = vadd.f32 %v472, %v798
        %v800 = vpop.f32.mrb[0].mxu0
        %v801 = vadd.f32 %v476, %v800
        %v802 = vpop.f32.mrb[0].mxu0
        %v803 = vadd.f32 %v472, %v802
        %v804 = vpop.f32.mrb[0].mxu0
        %v805 = vadd.f32 %v476, %v804
        %806 = vdwg.mxu0
        %v807 = vmax.f32 %v676, 0.0
        %v808 = vmax.f32 %v678, 0.0
        %v809 = vmax.f32 %v759, 0.0
        %v810 = vmax.f32 %v761, 0.0
        %v811 = vmax.f32 %v680, 0.0
        %v812 = vmax.f32 %v682, 0.0
        %v813 = vmax.f32 %v763, 0.0
        %v814 = vmax.f32 %v765, 0.0
        %v815 = vmax.f32 %v686, 0.0
        %v816 = vmax.f32 %v688, 0.0
        %v817 = vmax.f32 %v769, 0.0
        %v818 = vmax.f32 %v771, 0.0
        %v819 = vmax.f32 %v690, 0.0
        %v820 = vmax.f32 %v692, 0.0
        %v821 = vmax.f32 %v773, 0.0
        %v822 = vmax.f32 %v775, 0.0
        %v823 = vmax.f32 %v696, 0.0
        %v824 = vmax.f32 %v698, 0.0
        %v825 = vmax.f32 %v779, 0.0
        %v826 = vmax.f32 %v781, 0.0
        %v827 = vmax.f32 %v700, 0.0
        %v828 = vmax.f32 %v702, 0.0
        %v829 = vmax.f32 %v783, 0.0
        %v830 = vmax.f32 %v785, 0.0
        %v831 = vmax.f32 %v706, 0.0
        %v832 = vmax.f32 %v708, 0.0
        %v833 = vmax.f32 %v789, 0.0
        %v834 = vmax.f32 %v791, 0.0
        %v835 = vmax.f32 %v710, 0.0
        %v836 = vmax.f32 %v712, 0.0
        %v837 = vmax.f32 %v793, 0.0
        %v838 = vmax.f32 %v795, 0.0
        %v839 = vmax.f32 %v716, 0.0
        %v840 = vmax.f32 %v718, 0.0
        %v841 = vmax.f32 %v799, 0.0
        %v842 = vmax.f32 %v801, 0.0
        %v843 = vmax.f32 %v720, 0.0
        %v844 = vmax.f32 %v722, 0.0
        %v845 = vmax.f32 %v803, 0.0
        %v846 = vmax.f32 %v805, 0.0
        %v847 = vpack.c.bf16 %v811, %v807
        %v848 = vpack.c.bf16 %v812, %v808
        %v849 = vpack.c.bf16 %v813, %v809
        %v850 = vpack.c.bf16 %v814, %v810
        %v851 = vpack.c.bf16 %v819, %v815
        %v852 = vpack.c.bf16 %v820, %v816
        %v853 = vpack.c.bf16 %v821, %v817
        %v854 = vpack.c.bf16 %v822, %v818
        %v855 = vpack.c.bf16 %v827, %v823
        %v856 = vpack.c.bf16 %v828, %v824
        %v857 = vpack.c.bf16 %v829, %v825
        %v858 = vpack.c.bf16 %v830, %v826
        %v859 = vpack.c.bf16 %v835, %v831
        %v860 = vpack.c.bf16 %v836, %v832
        %v861 = vpack.c.bf16 %v837, %v833
        %v862 = vpack.c.bf16 %v838, %v834
        %v863 = vpack.c.bf16 %v843, %v839
        %v864 = vpack.c.bf16 %v844, %v840
        %v865 = vpack.c.bf16 %v845, %v841
        %v866 = vpack.c.bf16 %v846, %v842
        %v867 = vld [vmem:[#allocation7] sm:$0xff]
        %v868 = vld [vmem:[#allocation7 + $0x8] sm:$0xff]
        %v869 = vld [vmem:[#allocation7 + $0x10] sm:$0xff]
        %v870 = vld [vmem:[#allocation7 + $0x18] sm:$0xff]
        %v871 = vld [vmem:[#allocation7 + $0x20] sm:$0xff]
        %v872 = vld [vmem:[#allocation7 + $0x28] sm:$0xff]
        %v873 = vld [vmem:[#allocation7 + $0x30] sm:$0xff]
        %v874 = vld [vmem:[#allocation7 + $0x38] sm:$0xff]
        %v875 = vld [vmem:[#allocation7 + $0x40] sm:$0xff]
        %v876 = vld [vmem:[#allocation7 + $0x48] sm:$0xff]
        %v877 = vld [vmem:[#allocation7 + $0x50] sm:$0xff]
        %v878 = vld [vmem:[#allocation7 + $0x58] sm:$0xff]
        %v879 = vld [vmem:[#allocation7 + $0x60] sm:$0xff]
        %v880 = vld [vmem:[#allocation7 + $0x68] sm:$0xff]
        %v881 = vld [vmem:[#allocation7 + $0x70] sm:$0xff]
        %v882 = vld [vmem:[#allocation7 + $0x78] sm:$0xff]
        %v883 = vld [vmem:[#allocation7 + $0x80] sm:$0xff]
        %v884 = vld [vmem:[#allocation7 + $0x88] sm:$0xff]
        %v885 = vld [vmem:[#allocation7 + $0x90] sm:$0xff]
        %v886 = vld [vmem:[#allocation7 + $0x98] sm:$0xff]
        %v887 = vld [vmem:[#allocation7 + $0xa0] sm:$0xff]
        %v888 = vld [vmem:[#allocation7 + $0xa8] sm:$0xff]
        %v889 = vld [vmem:[#allocation7 + $0xb0] sm:$0xff]
        %v890 = vld [vmem:[#allocation7 + $0xb8] sm:$0xff]
        %v891 = vld [vmem:[#allocation7 + $0xc0] sm:$0xff]
        %v892 = vld [vmem:[#allocation7 + $0xc8] sm:$0xff]
        %v893 = vld [vmem:[#allocation7 + $0xd0] sm:$0xff]
        %v894 = vld [vmem:[#allocation7 + $0xd8] sm:$0xff]
        %v895 = vld [vmem:[#allocation7 + $0xe0] sm:$0xff]
        %v896 = vld [vmem:[#allocation7 + $0xe8] sm:$0xff]
        %v897 = vld [vmem:[#allocation7 + $0xf0] sm:$0xff]
        %v898 = vld [vmem:[#allocation7 + $0xf8] sm:$0xff]
        %v899 = vld [vmem:[#allocation7 + $0x100] sm:$0xff]
        %v900 = vld [vmem:[#allocation7 + $0x108] sm:$0xff]
        %v901 = vld [vmem:[#allocation7 + $0x110] sm:$0xff]
        %v902 = vld [vmem:[#allocation7 + $0x118] sm:$0xff]
        %v903 = vld [vmem:[#allocation7 + $0x120] sm:$0xff]
        %v904 = vld [vmem:[#allocation7 + $0x128] sm:$0xff]
        %v905 = vld [vmem:[#allocation7 + $0x130] sm:$0xff]
        %v906 = vld [vmem:[#allocation7 + $0x138] sm:$0xff]
        %v907 = vld [vmem:[#allocation7 + $0x140] sm:$0xff]
        %v908 = vld [vmem:[#allocation7 + $0x148] sm:$0xff]
        %v909 = vld [vmem:[#allocation7 + $0x150] sm:$0xff]
        %v910 = vld [vmem:[#allocation7 + $0x158] sm:$0xff]
        %v911 = vld [vmem:[#allocation7 + $0x160] sm:$0xff]
        %v912 = vld [vmem:[#allocation7 + $0x168] sm:$0xff]
        %v913 = vld [vmem:[#allocation7 + $0x170] sm:$0xff]
        %v914 = vld [vmem:[#allocation7 + $0x178] sm:$0xff]
        %v915 = vld [vmem:[#allocation7 + $0x180] sm:$0xff]
        %v916 = vld [vmem:[#allocation7 + $0x188] sm:$0xff]
        %v917 = vld [vmem:[#allocation7 + $0x190] sm:$0xff]
        %v918 = vld [vmem:[#allocation7 + $0x198] sm:$0xff]
        %v919 = vld [vmem:[#allocation7 + $0x1a0] sm:$0xff]
        %v920 = vld [vmem:[#allocation7 + $0x1a8] sm:$0xff]
        %v921 = vld [vmem:[#allocation7 + $0x1b0] sm:$0xff]
        %v922 = vld [vmem:[#allocation7 + $0x1b8] sm:$0xff]
        %v923 = vld [vmem:[#allocation7 + $0x1c0] sm:$0xff]
        %v924 = vld [vmem:[#allocation7 + $0x1c8] sm:$0xff]
        %v925 = vld [vmem:[#allocation7 + $0x1d0] sm:$0xff]
        %v926 = vld [vmem:[#allocation7 + $0x1d8] sm:$0xff]
        %v927 = vld [vmem:[#allocation7 + $0x1e0] sm:$0xff]
        %v928 = vld [vmem:[#allocation7 + $0x1e8] sm:$0xff]
        %v929 = vld [vmem:[#allocation7 + $0x1f0] sm:$0xff]
        %v930 = vld [vmem:[#allocation7 + $0x1f8] sm:$0xff]
        %v931 = vld [vmem:[%s4] sm:$0x3]
        %v933 = vlaneseq
        %v934 = vshrl.u32 %v933, 7
        %v935 = vsub.s32 0, %v934
        %v936 = vrot.slane %v931, %v935
        %v937 = vlaneseq
        %v938 = vshrl.u32 %v937, 7
        %v939 = vsub.s32 1, %v938
        %v940 = vrot.slane %v931, %v939
        %v1007 = vunpack.c.l.b16 %v867
        %v1008 = vunpack.c.h.b16 %v867
        %v1009 = vunpack.c.l.b16 %v868
        %v1010 = vunpack.c.h.b16 %v868
        %v1011 = vunpack.c.l.b16 %v869
        %v1012 = vunpack.c.h.b16 %v869
        %v1013 = vunpack.c.l.b16 %v870
        %v1014 = vunpack.c.h.b16 %v870
        %v1015 = vunpack.c.l.b16 %v871
        %v1016 = vunpack.c.h.b16 %v871
        %v1017 = vunpack.c.l.b16 %v872
        %v1018 = vunpack.c.h.b16 %v872
        %v1019 = vunpack.c.l.b16 %v873
        %v1020 = vunpack.c.h.b16 %v873
        %v1021 = vunpack.c.l.b16 %v874
        %v1022 = vunpack.c.h.b16 %v874
        %v1023 = vunpack.c.l.b16 %v875
        %v1024 = vunpack.c.h.b16 %v875
        %v1025 = vunpack.c.l.b16 %v876
        %v1026 = vunpack.c.h.b16 %v876
        %v1027 = vunpack.c.l.b16 %v877
        %v1028 = vunpack.c.h.b16 %v877
        %v1029 = vunpack.c.l.b16 %v878
        %v1030 = vunpack.c.h.b16 %v878
        %v1031 = vunpack.c.l.b16 %v879
        %v1032 = vunpack.c.h.b16 %v879
        %v1033 = vunpack.c.l.b16 %v880
        %v1034 = vunpack.c.h.b16 %v880
        %v1035 = vunpack.c.l.b16 %v881
        %v1036 = vunpack.c.h.b16 %v881
        %v1037 = vunpack.c.l.b16 %v882
        %v1038 = vunpack.c.h.b16 %v882
        %v1039 = vunpack.c.l.b16 %v883
        %v1040 = vunpack.c.h.b16 %v883
        %v1041 = vunpack.c.l.b16 %v884
        %v1042 = vunpack.c.h.b16 %v884
        %v1043 = vunpack.c.l.b16 %v885
        %v1044 = vunpack.c.h.b16 %v885
        %v1045 = vunpack.c.l.b16 %v886
        %v1046 = vunpack.c.h.b16 %v886
        %v1047 = vunpack.c.l.b16 %v887
        %v1048 = vunpack.c.h.b16 %v887
        %v1049 = vunpack.c.l.b16 %v888
        %v1050 = vunpack.c.h.b16 %v888
        %v1051 = vunpack.c.l.b16 %v889
        %v1052 = vunpack.c.h.b16 %v889
        %v1053 = vunpack.c.l.b16 %v890
        %v1054 = vunpack.c.h.b16 %v890
        %v1055 = vunpack.c.l.b16 %v891
        %v1056 = vunpack.c.h.b16 %v891
        %v1057 = vunpack.c.l.b16 %v892
        %v1058 = vunpack.c.h.b16 %v892
        %v1059 = vunpack.c.l.b16 %v893
        %v1060 = vunpack.c.h.b16 %v893
        %v1061 = vunpack.c.l.b16 %v894
        %v1062 = vunpack.c.h.b16 %v894
        %v1063 = vunpack.c.l.b16 %v895
        %v1064 = vunpack.c.h.b16 %v895
        %v1065 = vunpack.c.l.b16 %v896
        %v1066 = vunpack.c.h.b16 %v896
        %v1067 = vunpack.c.l.b16 %v897
        %v1068 = vunpack.c.h.b16 %v897
        %v1069 = vunpack.c.l.b16 %v898
        %v1070 = vunpack.c.h.b16 %v898
        %v1071 = vunpack.c.l.b16 %v899
        %v1072 = vunpack.c.h.b16 %v899
        %v1073 = vunpack.c.l.b16 %v900
        %v1074 = vunpack.c.h.b16 %v900
        %v1075 = vunpack.c.l.b16 %v901
        %v1076 = vunpack.c.h.b16 %v901
        %v1077 = vunpack.c.l.b16 %v902
        %v1078 = vunpack.c.h.b16 %v902
        %v1079 = vunpack.c.l.b16 %v903
        %v1080 = vunpack.c.h.b16 %v903
        %v1081 = vunpack.c.l.b16 %v904
        %v1082 = vunpack.c.h.b16 %v904
        %v1083 = vunpack.c.l.b16 %v905
        %v1084 = vunpack.c.h.b16 %v905
        %v1085 = vunpack.c.l.b16 %v906
        %v1086 = vunpack.c.h.b16 %v906
        %v1087 = vunpack.c.l.b16 %v907
        %v1088 = vunpack.c.h.b16 %v907
        %v1089 = vunpack.c.l.b16 %v908
        %v1090 = vunpack.c.h.b16 %v908
        %v1091 = vunpack.c.l.b16 %v909
        %v1092 = vunpack.c.h.b16 %v909
        %v1093 = vunpack.c.l.b16 %v910
        %v1094 = vunpack.c.h.b16 %v910
        %v1095 = vunpack.c.l.b16 %v911
        %v1096 = vunpack.c.h.b16 %v911
        %v1097 = vunpack.c.l.b16 %v912
        %v1098 = vunpack.c.h.b16 %v912
        %v1099 = vunpack.c.l.b16 %v913
        %v1100 = vunpack.c.h.b16 %v913
        %v1101 = vunpack.c.l.b16 %v914
        %v1102 = vunpack.c.h.b16 %v914
        %v1103 = vunpack.c.l.b16 %v915
        %v1104 = vunpack.c.h.b16 %v915
        %v1105 = vunpack.c.l.b16 %v916
        %v1106 = vunpack.c.h.b16 %v916
        %v1107 = vunpack.c.l.b16 %v917
        %v1108 = vunpack.c.h.b16 %v917
        %v1109 = vunpack.c.l.b16 %v918
        %v1110 = vunpack.c.h.b16 %v918
        %v1111 = vunpack.c.l.b16 %v919
        %v1112 = vunpack.c.h.b16 %v919
        %v1113 = vunpack.c.l.b16 %v920
        %v1114 = vunpack.c.h.b16 %v920
        %v1115 = vunpack.c.l.b16 %v921
        %v1116 = vunpack.c.h.b16 %v921
        %v1117 = vunpack.c.l.b16 %v922
        %v1118 = vunpack.c.h.b16 %v922
        %v1119 = vunpack.c.l.b16 %v923
        %v1120 = vunpack.c.h.b16 %v923
        %v1121 = vunpack.c.l.b16 %v924
        %v1122 = vunpack.c.h.b16 %v924
        %v1123 = vunpack.c.l.b16 %v925
        %v1124 = vunpack.c.h.b16 %v925
        %v1125 = vunpack.c.l.b16 %v926
        %v1126 = vunpack.c.h.b16 %v926
        %v1127 = vunpack.c.l.b16 %v927
        %v1128 = vunpack.c.h.b16 %v927
        %v1129 = vunpack.c.l.b16 %v928
        %v1130 = vunpack.c.h.b16 %v928
        %v1131 = vunpack.c.l.b16 %v929
        %v1132 = vunpack.c.h.b16 %v929
        %v1133 = vunpack.c.l.b16 %v930
        %v1134 = vunpack.c.h.b16 %v930
        %v1135 = vpack.c.b16 %v1009, %v1007
        %v1136 = vpack.c.b16 %v1010, %v1008
        %v1137 = vpack.c.b16 %v1013, %v1011
        %v1138 = vpack.c.b16 %v1014, %v1012
        %v1139 = vpack.c.b16 %v1017, %v1015
        %v1140 = vpack.c.b16 %v1018, %v1016
        %v1141 = vpack.c.b16 %v1021, %v1019
        %v1142 = vpack.c.b16 %v1022, %v1020
        %v1143 = vpack.c.b16 %v1025, %v1023
        %v1144 = vpack.c.b16 %v1026, %v1024
        %v1145 = vpack.c.b16 %v1029, %v1027
        %v1146 = vpack.c.b16 %v1030, %v1028
        %v1147 = vpack.c.b16 %v1033, %v1031
        %v1148 = vpack.c.b16 %v1034, %v1032
        %v1149 = vpack.c.b16 %v1037, %v1035
        %v1150 = vpack.c.b16 %v1038, %v1036
        %v1151 = vpack.c.b16 %v1041, %v1039
        %v1152 = vpack.c.b16 %v1042, %v1040
        %v1153 = vpack.c.b16 %v1045, %v1043
        %v1154 = vpack.c.b16 %v1046, %v1044
        %v1155 = vpack.c.b16 %v1049, %v1047
        %v1156 = vpack.c.b16 %v1050, %v1048
        %v1157 = vpack.c.b16 %v1053, %v1051
        %v1158 = vpack.c.b16 %v1054, %v1052
        %v1159 = vpack.c.b16 %v1057, %v1055
        %v1160 = vpack.c.b16 %v1058, %v1056
        %v1161 = vpack.c.b16 %v1061, %v1059
        %v1162 = vpack.c.b16 %v1062, %v1060
        %v1163 = vpack.c.b16 %v1065, %v1063
        %v1164 = vpack.c.b16 %v1066, %v1064
        %v1165 = vpack.c.b16 %v1069, %v1067
        %v1166 = vpack.c.b16 %v1070, %v1068
        %v1167 = vpack.c.b16 %v1073, %v1071
        %v1168 = vpack.c.b16 %v1074, %v1072
        %v1169 = vpack.c.b16 %v1077, %v1075
        %v1170 = vpack.c.b16 %v1078, %v1076
        %v1171 = vpack.c.b16 %v1081, %v1079
        %v1172 = vpack.c.b16 %v1082, %v1080
        %v1173 = vpack.c.b16 %v1085, %v1083
        %v1174 = vpack.c.b16 %v1086, %v1084
        %v1175 = vpack.c.b16 %v1089, %v1087
        %v1176 = vpack.c.b16 %v1090, %v1088
        %v1177 = vpack.c.b16 %v1093, %v1091
        %v1178 = vpack.c.b16 %v1094, %v1092
        %v1179 = vpack.c.b16 %v1097, %v1095
        %v1180 = vpack.c.b16 %v1098, %v1096
        %v1181 = vpack.c.b16 %v1101, %v1099
        %v1182 = vpack.c.b16 %v1102, %v1100
        %v1183 = vpack.c.b16 %v1105, %v1103
        %v1184 = vpack.c.b16 %v1106, %v1104
        %v1185 = vpack.c.b16 %v1109, %v1107
        %v1186 = vpack.c.b16 %v1110, %v1108
        %v1187 = vpack.c.b16 %v1113, %v1111
        %v1188 = vpack.c.b16 %v1114, %v1112
        %v1189 = vpack.c.b16 %v1117, %v1115
        %v1190 = vpack.c.b16 %v1118, %v1116
        %v1191 = vpack.c.b16 %v1121, %v1119
        %v1192 = vpack.c.b16 %v1122, %v1120
        %v1193 = vpack.c.b16 %v1125, %v1123
        %v1194 = vpack.c.b16 %v1126, %v1124
        %v1195 = vpack.c.b16 %v1129, %v1127
        %v1196 = vpack.c.b16 %v1130, %v1128
        %v1197 = vpack.c.b16 %v1133, %v1131
        %v1198 = vpack.c.b16 %v1134, %v1132
        %1263 = vmatprep.subr.bf16.mxu0 %v1136
        %1264 = vmatpush1.bf16.msra.mxu0 %v1135
        %1265 = vmatprep.subr.bf16.mxu0 %v1138
        %1266 = vmatpush1.bf16.msra.mxu0 %v1137
        %1267 = vmatprep.subr.bf16.mxu0 %v1140
        %1268 = vmatpush1.bf16.msra.mxu0 %v1139
        %1269 = vmatprep.subr.bf16.mxu0 %v1142
        %1270 = vmatpush1.bf16.msra.mxu0 %v1141
        %1271 = vmatprep.subr.bf16.mxu0 %v1144
        %1272 = vmatpush1.bf16.msra.mxu0 %v1143
        %1273 = vmatprep.subr.bf16.mxu0 %v1146
        %1274 = vmatpush1.bf16.msra.mxu0 %v1145
        %1275 = vmatprep.subr.bf16.mxu0 %v1148
        %1276 = vmatpush1.bf16.msra.mxu0 %v1147
        %1277 = vmatprep.subr.bf16.mxu0 %v1150
        %1278 = vmatpush1.bf16.msra.mxu0 %v1149
        %1279 = vmatprep.subr.bf16.mxu0 %v1152
        %1280 = vmatpush1.bf16.msra.mxu0 %v1151
        %1281 = vmatprep.subr.bf16.mxu0 %v1154
        %1282 = vmatpush1.bf16.msra.mxu0 %v1153
        %1283 = vmatprep.subr.bf16.mxu0 %v1156
        %1284 = vmatpush1.bf16.msra.mxu0 %v1155
        %1285 = vmatprep.subr.bf16.mxu0 %v1158
        %1286 = vmatpush1.bf16.msra.mxu0 %v1157
        %1287 = vmatprep.subr.bf16.mxu0 %v1160
        %1288 = vmatpush1.bf16.msra.mxu0 %v1159
        %1289 = vmatprep.subr.bf16.mxu0 %v1162
        %1290 = vmatpush1.bf16.msra.mxu0 %v1161
        %1291 = vmatprep.subr.bf16.mxu0 %v1164
        %1292 = vmatpush1.bf16.msra.mxu0 %v1163
        %1293 = vmatprep.subr.bf16.mxu0 %v1166
        %1294 = vmatpush1.bf16.msra.mxu0 %v1165
        %1295 = vmatprep.mubr.bf16.mxu0 %v848
        %1296 = vmatmul.mubr.bf16.gmra.mrb[0].mxu0 %v847
        %v1297 = vpop.f32.mrb[0].mxu0
        %v1298 = vadd.f32 %v936, %v1297
        %v1299 = vpop.f32.mrb[0].mxu0
        %v1300 = vadd.f32 %v940, %v1299
        %v1301 = vpop.f32.mrb[0].mxu0
        %v1302 = vadd.f32 %v936, %v1301
        %v1303 = vpop.f32.mrb[0].mxu0
        %v1304 = vadd.f32 %v940, %v1303
        %1305 = vmatprep.mubr.bf16.mxu0 %v852
        %1306 = vmatmul.mubr.bf16.gmra.mrb[0].mxu0 %v851
        %v1307 = vpop.f32.mrb[0].mxu0
        %v1308 = vadd.f32 %v936, %v1307
        %v1309 = vpop.f32.mrb[0].mxu0
        %v1310 = vadd.f32 %v940, %v1309
        %v1311 = vpop.f32.mrb[0].mxu0
        %v1312 = vadd.f32 %v936, %v1311
        %v1313 = vpop.f32.mrb[0].mxu0
        %v1314 = vadd.f32 %v940, %v1313
        %1315 = vmatprep.mubr.bf16.mxu0 %v856
        %1316 = vmatmul.mubr.bf16.gmra.mrb[0].mxu0 %v855
        %v1317 = vpop.f32.mrb[0].mxu0
        %v1318 = vadd.f32 %v936, %v1317
        %v1319 = vpop.f32.mrb[0].mxu0
        %v1320 = vadd.f32 %v940, %v1319
        %v1321 = vpop.f32.mrb[0].mxu0
        %v1322 = vadd.f32 %v936, %v1321
        %v1323 = vpop.f32.mrb[0].mxu0
        %v1324 = vadd.f32 %v940, %v1323
        %1325 = vmatprep.mubr.bf16.mxu0 %v860
        %1326 = vmatmul.mubr.bf16.gmra.mrb[0].mxu0 %v859
        %v1327 = vpop.f32.mrb[0].mxu0
        %v1328 = vadd.f32 %v936, %v1327
        %v1329 = vpop.f32.mrb[0].mxu0
        %v1330 = vadd.f32 %v940, %v1329
        %v1331 = vpop.f32.mrb[0].mxu0
        %v1332 = vadd.f32 %v936, %v1331
        %v1333 = vpop.f32.mrb[0].mxu0
        %v1334 = vadd.f32 %v940, %v1333
        %1335 = vmatprep.mubr.bf16.mxu0 %v864
        %1336 = vmatmul.mubr.bf16.gmra.mrb[0].mxu0 %v863
        %v1337 = vpop.f32.mrb[0].mxu0
        %v1338 = vadd.f32 %v936, %v1337
        %v1339 = vpop.f32.mrb[0].mxu0
        %v1340 = vadd.f32 %v940, %v1339
        %v1341 = vpop.f32.mrb[0].mxu0
        %v1342 = vadd.f32 %v936, %v1341
        %v1343 = vpop.f32.mrb[0].mxu0
        %v1344 = vadd.f32 %v940, %v1343
        %1345 = vdwg.mxu0
        %1346 = vmatprep.subr.bf16.mxu0 %v1168
        %1347 = vmatpush1.bf16.msra.mxu0 %v1167
        %1348 = vmatprep.subr.bf16.mxu0 %v1170
        %1349 = vmatpush1.bf16.msra.mxu0 %v1169
        %1350 = vmatprep.subr.bf16.mxu0 %v1172
        %1351 = vmatpush1.bf16.msra.mxu0 %v1171
        %1352 = vmatprep.subr.bf16.mxu0 %v1174
        %1353 = vmatpush1.bf16.msra.mxu0 %v1173
        %1354 = vmatprep.subr.bf16.mxu0 %v1176
        %1355 = vmatpush1.bf16.msra.mxu0 %v1175
        %1356 = vmatprep.subr.bf16.mxu0 %v1178
        %1357 = vmatpush1.bf16.msra.mxu0 %v1177
        %1358 = vmatprep.subr.bf16.mxu0 %v1180
        %1359 = vmatpush1.bf16.msra.mxu0 %v1179
        %1360 = vmatprep.subr.bf16.mxu0 %v1182
        %1361 = vmatpush1.bf16.msra.mxu0 %v1181
        %1362 = vmatprep.subr.bf16.mxu0 %v1184
        %1363 = vmatpush1.bf16.msra.mxu0 %v1183
        %1364 = vmatprep.subr.bf16.mxu0 %v1186
        %1365 = vmatpush1.bf16.msra.mxu0 %v1185
        %1366 = vmatprep.subr.bf16.mxu0 %v1188
        %1367 = vmatpush1.bf16.msra.mxu0 %v1187
        %1368 = vmatprep.subr.bf16.mxu0 %v1190
        %1369 = vmatpush1.bf16.msra.mxu0 %v1189
        %1370 = vmatprep.subr.bf16.mxu0 %v1192
        %1371 = vmatpush1.bf16.msra.mxu0 %v1191
        %1372 = vmatprep.subr.bf16.mxu0 %v1194
        %1373 = vmatpush1.bf16.msra.mxu0 %v1193
        %1374 = vmatprep.subr.bf16.mxu0 %v1196
        %1375 = vmatpush1.bf16.msra.mxu0 %v1195
        %1376 = vmatprep.subr.bf16.mxu0 %v1198
        %1377 = vmatpush1.bf16.msra.mxu0 %v1197
        %1378 = vmatprep.mubr.bf16.mxu0 %v850
        %1379 = vmatmul.mubr.bf16.gmra.mrb[0].mxu0 %v849
        %v1380 = vpop.f32.mrb[0].mxu0
        %v1381 = vadd.f32 %v1298, %v1380
        %v1382 = vpop.f32.mrb[0].mxu0
        %v1383 = vadd.f32 %v1300, %v1382
        %v1384 = vpop.f32.mrb[0].mxu0
        %v1385 = vadd.f32 %v1302, %v1384
        %v1386 = vpop.f32.mrb[0].mxu0
        %v1387 = vadd.f32 %v1304, %v1386
        %1388 = vmatprep.mubr.bf16.mxu0 %v854
        %1389 = vmatmul.mubr.bf16.gmra.mrb[0].mxu0 %v853
        %v1390 = vpop.f32.mrb[0].mxu0
        %v1391 = vadd.f32 %v1308, %v1390
        %v1392 = vpop.f32.mrb[0].mxu0
        %v1393 = vadd.f32 %v1310, %v1392
        %v1394 = vpop.f32.mrb[0].mxu0
        %v1395 = vadd.f32 %v1312, %v1394
        %v1396 = vpop.f32.mrb[0].mxu0
        %v1397 = vadd.f32 %v1314, %v1396
        %1398 = vmatprep.mubr.bf16.mxu0 %v858
        %1399 = vmatmul.mubr.bf16.gmra.mrb[0].mxu0 %v857
        %v1400 = vpop.f32.mrb[0].mxu0
        %v1401 = vadd.f32 %v1318, %v1400
        %v1402 = vpop.f32.mrb[0].mxu0
        %v1403 = vadd.f32 %v1320, %v1402
        %v1404 = vpop.f32.mrb[0].mxu0
        %v1405 = vadd.f32 %v1322, %v1404
        %v1406 = vpop.f32.mrb[0].mxu0
        %v1407 = vadd.f32 %v1324, %v1406
        %1408 = vmatprep.mubr.bf16.mxu0 %v862
        %1409 = vmatmul.mubr.bf16.gmra.mrb[0].mxu0 %v861
        %v1410 = vpop.f32.mrb[0].mxu0
        %v1411 = vadd.f32 %v1328, %v1410
        %v1412 = vpop.f32.mrb[0].mxu0
        %v1413 = vadd.f32 %v1330, %v1412
        %v1414 = vpop.f32.mrb[0].mxu0
        %v1415 = vadd.f32 %v1332, %v1414
        %v1416 = vpop.f32.mrb[0].mxu0
        %v1417 = vadd.f32 %v1334, %v1416
        %1418 = vmatprep.mubr.bf16.mxu0 %v866
        %1419 = vmatmul.mubr.bf16.gmra.mrb[0].mxu0 %v865
        %v1420 = vpop.f32.mrb[0].mxu0
        %v1421 = vadd.f32 %v1338, %v1420
        %v1422 = vpop.f32.mrb[0].mxu0
        %v1423 = vadd.f32 %v1340, %v1422
        %v1424 = vpop.f32.mrb[0].mxu0
        %v1425 = vadd.f32 %v1342, %v1424
        %v1426 = vpop.f32.mrb[0].mxu0
        %v1427 = vadd.f32 %v1344, %v1426
        %1428 = vdwg.mxu0
        %v1429 = vmax.f32 %v1381, 0.0
        %v1430 = vmax.f32 %v1383, 0.0
        %v1431 = vmax.f32 %v1385, 0.0
        %v1432 = vmax.f32 %v1387, 0.0
        %v1433 = vmax.f32 %v1391, 0.0
        %v1434 = vmax.f32 %v1393, 0.0
        %v1435 = vmax.f32 %v1395, 0.0
        %v1436 = vmax.f32 %v1397, 0.0
        %v1437 = vmax.f32 %v1401, 0.0
        %v1438 = vmax.f32 %v1403, 0.0
        %v1439 = vmax.f32 %v1405, 0.0
        %v1440 = vmax.f32 %v1407, 0.0
        %v1441 = vmax.f32 %v1411, 0.0
        %v1442 = vmax.f32 %v1413, 0.0
        %v1443 = vmax.f32 %v1415, 0.0
        %v1444 = vmax.f32 %v1417, 0.0
        %v1445 = vmax.f32 %v1421, 0.0
        %v1446 = vmax.f32 %v1423, 0.0
        %v1447 = vmax.f32 %v1425, 0.0
        %v1448 = vmax.f32 %v1427, 0.0
        %v1449 = vpack.c.bf16 %v1431, %v1429
        %v1450 = vpack.c.bf16 %v1432, %v1430
        %v1451 = vpack.c.bf16 %v1435, %v1433
        %v1452 = vpack.c.bf16 %v1436, %v1434
        %v1453 = vpack.c.bf16 %v1439, %v1437
        %v1454 = vpack.c.bf16 %v1440, %v1438
        %v1455 = vpack.c.bf16 %v1443, %v1441
        %v1456 = vpack.c.bf16 %v1444, %v1442
        %v1457 = vpack.c.bf16 %v1447, %v1445
        %v1458 = vpack.c.bf16 %v1448, %v1446
        %v1459 = vld [vmem:[#allocation8] sm:$0xff]
        %v1460 = vld [vmem:[#allocation8 + $0x8] sm:$0xff]
        %v1461 = vld [vmem:[#allocation8 + $0x10] sm:$0xff]
        %v1462 = vld [vmem:[#allocation8 + $0x18] sm:$0xff]
        %v1463 = vld [vmem:[#allocation8 + $0x20] sm:$0xff]
        %v1464 = vld [vmem:[#allocation8 + $0x28] sm:$0xff]
        %v1465 = vld [vmem:[#allocation8 + $0x30] sm:$0xff]
        %v1466 = vld [vmem:[#allocation8 + $0x38] sm:$0xff]
        %v1467 = vld [vmem:[#allocation8 + $0x40] sm:$0xff]
        %v1468 = vld [vmem:[#allocation8 + $0x48] sm:$0xff]
        %v1469 = vld [vmem:[#allocation8 + $0x50] sm:$0xff]
        %v1470 = vld [vmem:[#allocation8 + $0x58] sm:$0xff]
        %v1471 = vld [vmem:[#allocation8 + $0x60] sm:$0xff]
        %v1472 = vld [vmem:[#allocation8 + $0x68] sm:$0xff]
        %v1473 = vld [vmem:[#allocation8 + $0x70] sm:$0xff]
        %v1474 = vld [vmem:[#allocation8 + $0x78] sm:$0xff]
        %v1475 = vld [vmem:[#allocation8 + $0x80] sm:$0xff]
        %v1476 = vld [vmem:[#allocation8 + $0x88] sm:$0xff]
        %v1477 = vld [vmem:[#allocation8 + $0x90] sm:$0xff]
        %v1478 = vld [vmem:[#allocation8 + $0x98] sm:$0xff]
        %v1479 = vld [vmem:[#allocation8 + $0xa0] sm:$0xff]
        %v1480 = vld [vmem:[#allocation8 + $0xa8] sm:$0xff]
        %v1481 = vld [vmem:[#allocation8 + $0xb0] sm:$0xff]
        %v1482 = vld [vmem:[#allocation8 + $0xb8] sm:$0xff]
        %v1483 = vld [vmem:[#allocation8 + $0xc0] sm:$0xff]
        %v1484 = vld [vmem:[#allocation8 + $0xc8] sm:$0xff]
        %v1485 = vld [vmem:[#allocation8 + $0xd0] sm:$0xff]
        %v1486 = vld [vmem:[#allocation8 + $0xd8] sm:$0xff]
        %v1487 = vld [vmem:[#allocation8 + $0xe0] sm:$0xff]
        %v1488 = vld [vmem:[#allocation8 + $0xe8] sm:$0xff]
        %v1489 = vld [vmem:[#allocation8 + $0xf0] sm:$0xff]
        %v1490 = vld [vmem:[#allocation8 + $0xf8] sm:$0xff]
        %v1491 = vld [vmem:[#allocation8 + $0x100] sm:$0xff]
        %v1492 = vld [vmem:[#allocation8 + $0x108] sm:$0xff]
        %v1493 = vld [vmem:[#allocation8 + $0x110] sm:$0xff]
        %v1494 = vld [vmem:[#allocation8 + $0x118] sm:$0xff]
        %v1495 = vld [vmem:[#allocation8 + $0x120] sm:$0xff]
        %v1496 = vld [vmem:[#allocation8 + $0x128] sm:$0xff]
        %v1497 = vld [vmem:[#allocation8 + $0x130] sm:$0xff]
        %v1498 = vld [vmem:[#allocation8 + $0x138] sm:$0xff]
        %v1499 = vld [vmem:[#allocation8 + $0x140] sm:$0xff]
        %v1500 = vld [vmem:[#allocation8 + $0x148] sm:$0xff]
        %v1501 = vld [vmem:[#allocation8 + $0x150] sm:$0xff]
        %v1502 = vld [vmem:[#allocation8 + $0x158] sm:$0xff]
        %v1503 = vld [vmem:[#allocation8 + $0x160] sm:$0xff]
        %v1504 = vld [vmem:[#allocation8 + $0x168] sm:$0xff]
        %v1505 = vld [vmem:[#allocation8 + $0x170] sm:$0xff]
        %v1506 = vld [vmem:[#allocation8 + $0x178] sm:$0xff]
        %v1507 = vld [vmem:[#allocation8 + $0x180] sm:$0xff]
        %v1508 = vld [vmem:[#allocation8 + $0x188] sm:$0xff]
        %v1509 = vld [vmem:[#allocation8 + $0x190] sm:$0xff]
        %v1510 = vld [vmem:[#allocation8 + $0x198] sm:$0xff]
        %v1511 = vld [vmem:[#allocation8 + $0x1a0] sm:$0xff]
        %v1512 = vld [vmem:[#allocation8 + $0x1a8] sm:$0xff]
        %v1513 = vld [vmem:[#allocation8 + $0x1b0] sm:$0xff]
        %v1514 = vld [vmem:[#allocation8 + $0x1b8] sm:$0xff]
        %v1515 = vld [vmem:[#allocation8 + $0x1c0] sm:$0xff]
        %v1516 = vld [vmem:[#allocation8 + $0x1c8] sm:$0xff]
        %v1517 = vld [vmem:[#allocation8 + $0x1d0] sm:$0xff]
        %v1518 = vld [vmem:[#allocation8 + $0x1d8] sm:$0xff]
        %v1519 = vld [vmem:[#allocation8 + $0x1e0] sm:$0xff]
        %v1520 = vld [vmem:[#allocation8 + $0x1e8] sm:$0xff]
        %v1521 = vld [vmem:[#allocation8 + $0x1f0] sm:$0xff]
        %v1522 = vld [vmem:[#allocation8 + $0x1f8] sm:$0xff]
        %v1523 = vld [vmem:[%s6] sm:$0xf]
        %v1525 = vlaneseq
        %v1526 = vshrl.u32 %v1525, 7
        %v1527 = vsub.s32 0, %v1526
        %v1528 = vrot.slane %v1523, %v1527
        %v1529 = vlaneseq
        %v1530 = vshrl.u32 %v1529, 7
        %v1531 = vsub.s32 1, %v1530
        %v1532 = vrot.slane %v1523, %v1531
        %v1533 = vlaneseq
        %v1534 = vshrl.u32 %v1533, 7
        %v1535 = vsub.s32 2, %v1534
        %v1536 = vrot.slane %v1523, %v1535
        %v1537 = vlaneseq
        %v1538 = vshrl.u32 %v1537, 7
        %v1539 = vsub.s32 3, %v1538
        %v1540 = vrot.slane %v1523, %v1539
        %v1609 = vunpack.c.l.b16 %v1459
        %v1610 = vunpack.c.h.b16 %v1459
        %v1611 = vunpack.c.l.b16 %v1460
        %v1612 = vunpack.c.h.b16 %v1460
        %v1613 = vunpack.c.l.b16 %v1461
        %v1614 = vunpack.c.h.b16 %v1461
        %v1615 = vunpack.c.l.b16 %v1462
        %v1616 = vunpack.c.h.b16 %v1462
        %v1617 = vunpack.c.l.b16 %v1463
        %v1618 = vunpack.c.h.b16 %v1463
        %v1619 = vunpack.c.l.b16 %v1464
        %v1620 = vunpack.c.h.b16 %v1464
        %v1621 = vunpack.c.l.b16 %v1465
        %v1622 = vunpack.c.h.b16 %v1465
        %v1623 = vunpack.c.l.b16 %v1466
        %v1624 = vunpack.c.h.b16 %v1466
        %v1625 = vunpack.c.l.b16 %v1467
        %v1626 = vunpack.c.h.b16 %v1467
        %v1627 = vunpack.c.l.b16 %v1468
        %v1628 = vunpack.c.h.b16 %v1468
        %v1629 = vunpack.c.l.b16 %v1469
        %v1630 = vunpack.c.h.b16 %v1469
        %v1631 = vunpack.c.l.b16 %v1470
        %v1632 = vunpack.c.h.b16 %v1470
        %v1633 = vunpack.c.l.b16 %v1471
        %v1634 = vunpack.c.h.b16 %v1471
        %v1635 = vunpack.c.l.b16 %v1472
        %v1636 = vunpack.c.h.b16 %v1472
        %v1637 = vunpack.c.l.b16 %v1473
        %v1638 = vunpack.c.h.b16 %v1473
        %v1639 = vunpack.c.l.b16 %v1474
        %v1640 = vunpack.c.h.b16 %v1474
        %v1641 = vunpack.c.l.b16 %v1475
        %v1642 = vunpack.c.h.b16 %v1475
        %v1643 = vunpack.c.l.b16 %v1476
        %v1644 = vunpack.c.h.b16 %v1476
        %v1645 = vunpack.c.l.b16 %v1477
        %v1646 = vunpack.c.h.b16 %v1477
        %v1647 = vunpack.c.l.b16 %v1478
        %v1648 = vunpack.c.h.b16 %v1478
        %v1649 = vunpack.c.l.b16 %v1479
        %v1650 = vunpack.c.h.b16 %v1479
        %v1651 = vunpack.c.l.b16 %v1480
        %v1652 = vunpack.c.h.b16 %v1480
        %v1653 = vunpack.c.l.b16 %v1481
        %v1654 = vunpack.c.h.b16 %v1481
        %v1655 = vunpack.c.l.b16 %v1482
        %v1656 = vunpack.c.h.b16 %v1482
        %v1657 = vunpack.c.l.b16 %v1483
        %v1658 = vunpack.c.h.b16 %v1483
        %v1659 = vunpack.c.l.b16 %v1484
        %v1660 = vunpack.c.h.b16 %v1484
        %v1661 = vunpack.c.l.b16 %v1485
        %v1662 = vunpack.c.h.b16 %v1485
        %v1663 = vunpack.c.l.b16 %v1486
        %v1664 = vunpack.c.h.b16 %v1486
        %v1665 = vunpack.c.l.b16 %v1487
        %v1666 = vunpack.c.h.b16 %v1487
        %v1667 = vunpack.c.l.b16 %v1488
        %v1668 = vunpack.c.h.b16 %v1488
        %v1669 = vunpack.c.l.b16 %v1489
        %v1670 = vunpack.c.h.b16 %v1489
        %v1671 = vunpack.c.l.b16 %v1490
        %v1672 = vunpack.c.h.b16 %v1490
        %v1673 = vunpack.c.l.b16 %v1491
        %v1674 = vunpack.c.h.b16 %v1491
        %v1675 = vunpack.c.l.b16 %v1492
        %v1676 = vunpack.c.h.b16 %v1492
        %v1677 = vunpack.c.l.b16 %v1493
        %v1678 = vunpack.c.h.b16 %v1493
        %v1679 = vunpack.c.l.b16 %v1494
        %v1680 = vunpack.c.h.b16 %v1494
        %v1681 = vunpack.c.l.b16 %v1495
        %v1682 = vunpack.c.h.b16 %v1495
        %v1683 = vunpack.c.l.b16 %v1496
        %v1684 = vunpack.c.h.b16 %v1496
        %v1685 = vunpack.c.l.b16 %v1497
        %v1686 = vunpack.c.h.b16 %v1497
        %v1687 = vunpack.c.l.b16 %v1498
        %v1688 = vunpack.c.h.b16 %v1498
        %v1689 = vunpack.c.l.b16 %v1499
        %v1690 = vunpack.c.h.b16 %v1499
        %v1691 = vunpack.c.l.b16 %v1500
        %v1692 = vunpack.c.h.b16 %v1500
        %v1693 = vunpack.c.l.b16 %v1501
        %v1694 = vunpack.c.h.b16 %v1501
        %v1695 = vunpack.c.l.b16 %v1502
        %v1696 = vunpack.c.h.b16 %v1502
        %v1697 = vunpack.c.l.b16 %v1503
        %v1698 = vunpack.c.h.b16 %v1503
        %v1699 = vunpack.c.l.b16 %v1504
        %v1700 = vunpack.c.h.b16 %v1504
        %v1701 = vunpack.c.l.b16 %v1505
        %v1702 = vunpack.c.h.b16 %v1505
        %v1703 = vunpack.c.l.b16 %v1506
        %v1704 = vunpack.c.h.b16 %v1506
        %v1705 = vunpack.c.l.b16 %v1507
        %v1706 = vunpack.c.h.b16 %v1507
        %v1707 = vunpack.c.l.b16 %v1508
        %v1708 = vunpack.c.h.b16 %v1508
        %v1709 = vunpack.c.l.b16 %v1509
        %v1710 = vunpack.c.h.b16 %v1509
        %v1711 = vunpack.c.l.b16 %v1510
        %v1712 = vunpack.c.h.b16 %v1510
        %v1713 = vunpack.c.l.b16 %v1511
        %v1714 = vunpack.c.h.b16 %v1511
        %v1715 = vunpack.c.l.b16 %v1512
        %v1716 = vunpack.c.h.b16 %v1512
        %v1717 = vunpack.c.l.b16 %v1513
        %v1718 = vunpack.c.h.b16 %v1513
        %v1719 = vunpack.c.l.b16 %v1514
        %v1720 = vunpack.c.h.b16 %v1514
        %v1721 = vunpack.c.l.b16 %v1515
        %v1722 = vunpack.c.h.b16 %v1515
        %v1723 = vunpack.c.l.b16 %v1516
        %v1724 = vunpack.c.h.b16 %v1516
        %v1725 = vunpack.c.l.b16 %v1517
        %v1726 = vunpack.c.h.b16 %v1517
        %v1727 = vunpack.c.l.b16 %v1518
        %v1728 = vunpack.c.h.b16 %v1518
        %v1729 = vunpack.c.l.b16 %v1519
        %v1730 = vunpack.c.h.b16 %v1519
        %v1731 = vunpack.c.l.b16 %v1520
        %v1732 = vunpack.c.h.b16 %v1520
        %v1733 = vunpack.c.l.b16 %v1521
        %v1734 = vunpack.c.h.b16 %v1521
        %v1735 = vunpack.c.l.b16 %v1522
        %v1736 = vunpack.c.h.b16 %v1522
        %v1737 = vpack.c.b16 %v1613, %v1609
        %v1738 = vpack.c.b16 %v1614, %v1610
        %v1739 = vpack.c.b16 %v1615, %v1611
        %v1740 = vpack.c.b16 %v1616, %v1612
        %v1741 = vpack.c.b16 %v1621, %v1617
        %v1742 = vpack.c.b16 %v1622, %v1618
        %v1743 = vpack.c.b16 %v1623, %v1619
        %v1744 = vpack.c.b16 %v1624, %v1620
        %v1745 = vpack.c.b16 %v1629, %v1625
        %v1746 = vpack.c.b16 %v1630, %v1626
        %v1747 = vpack.c.b16 %v1631, %v1627
        %v1748 = vpack.c.b16 %v1632, %v1628
        %v1749 = vpack.c.b16 %v1637, %v1633
        %v1750 = vpack.c.b16 %v1638, %v1634
        %v1751 = vpack.c.b16 %v1639, %v1635
        %v1752 = vpack.c.b16 %v1640, %v1636
        %v1753 = vpack.c.b16 %v1645, %v1641
        %v1754 = vpack.c.b16 %v1646, %v1642
        %v1755 = vpack.c.b16 %v1647, %v1643
        %v1756 = vpack.c.b16 %v1648, %v1644
        %v1757 = vpack.c.b16 %v1653, %v1649
        %v1758 = vpack.c.b16 %v1654, %v1650
        %v1759 = vpack.c.b16 %v1655, %v1651
        %v1760 = vpack.c.b16 %v1656, %v1652
        %v1761 = vpack.c.b16 %v1661, %v1657
        %v1762 = vpack.c.b16 %v1662, %v1658
        %v1763 = vpack.c.b16 %v1663, %v1659
        %v1764 = vpack.c.b16 %v1664, %v1660
        %v1765 = vpack.c.b16 %v1669, %v1665
        %v1766 = vpack.c.b16 %v1670, %v1666
        %v1767 = vpack.c.b16 %v1671, %v1667
        %v1768 = vpack.c.b16 %v1672, %v1668
        %v1769 = vpack.c.b16 %v1677, %v1673
        %v1770 = vpack.c.b16 %v1678, %v1674
        %v1771 = vpack.c.b16 %v1679, %v1675
        %v1772 = vpack.c.b16 %v1680, %v1676
        %v1773 = vpack.c.b16 %v1685, %v1681
        %v1774 = vpack.c.b16 %v1686, %v1682
        %v1775 = vpack.c.b16 %v1687, %v1683
        %v1776 = vpack.c.b16 %v1688, %v1684
        %v1777 = vpack.c.b16 %v1693, %v1689
        %v1778 = vpack.c.b16 %v1694, %v1690
        %v1779 = vpack.c.b16 %v1695, %v1691
        %v1780 = vpack.c.b16 %v1696, %v1692
        %v1781 = vpack.c.b16 %v1701, %v1697
        %v1782 = vpack.c.b16 %v1702, %v1698
        %v1783 = vpack.c.b16 %v1703, %v1699
        %v1784 = vpack.c.b16 %v1704, %v1700
        %v1785 = vpack.c.b16 %v1709, %v1705
        %v1786 = vpack.c.b16 %v1710, %v1706
        %v1787 = vpack.c.b16 %v1711, %v1707
        %v1788 = vpack.c.b16 %v1712, %v1708
        %v1789 = vpack.c.b16 %v1717, %v1713
        %v1790 = vpack.c.b16 %v1718, %v1714
        %v1791 = vpack.c.b16 %v1719, %v1715
        %v1792 = vpack.c.b16 %v1720, %v1716
        %v1793 = vpack.c.b16 %v1725, %v1721
        %v1794 = vpack.c.b16 %v1726, %v1722
        %v1795 = vpack.c.b16 %v1727, %v1723
        %v1796 = vpack.c.b16 %v1728, %v1724
        %v1797 = vpack.c.b16 %v1733, %v1729
        %v1798 = vpack.c.b16 %v1734, %v1730
        %v1799 = vpack.c.b16 %v1735, %v1731
        %v1800 = vpack.c.b16 %v1736, %v1732
        %1865 = vmatprep.subr.bf16.mxu0 %v1738
        %1866 = vmatpush1.bf16.msra.mxu0 %v1737
        %1867 = vmatprep.subr.bf16.mxu0 %v1742
        %1868 = vmatpush1.bf16.msra.mxu0 %v1741
        %1869 = vmatprep.subr.bf16.mxu0 %v1746
        %1870 = vmatpush1.bf16.msra.mxu0 %v1745
        %1871 = vmatprep.subr.bf16.mxu0 %v1750
        %1872 = vmatpush1.bf16.msra.mxu0 %v1749
        %1873 = vmatprep.subr.bf16.mxu0 %v1754
        %1874 = vmatpush1.bf16.msra.mxu0 %v1753
        %1875 = vmatprep.subr.bf16.mxu0 %v1758
        %1876 = vmatpush1.bf16.msra.mxu0 %v1757
        %1877 = vmatprep.subr.bf16.mxu0 %v1762
        %1878 = vmatpush1.bf16.msra.mxu0 %v1761
        %1879 = vmatprep.subr.bf16.mxu0 %v1766
        %1880 = vmatpush1.bf16.msra.mxu0 %v1765
        %1881 = vmatprep.subr.bf16.mxu0 %v1770
        %1882 = vmatpush1.bf16.msra.mxu0 %v1769
        %1883 = vmatprep.subr.bf16.mxu0 %v1774
        %1884 = vmatpush1.bf16.msra.mxu0 %v1773
        %1885 = vmatprep.subr.bf16.mxu0 %v1778
        %1886 = vmatpush1.bf16.msra.mxu0 %v1777
        %1887 = vmatprep.subr.bf16.mxu0 %v1782
        %1888 = vmatpush1.bf16.msra.mxu0 %v1781
        %1889 = vmatprep.subr.bf16.mxu0 %v1786
        %1890 = vmatpush1.bf16.msra.mxu0 %v1785
        %1891 = vmatprep.subr.bf16.mxu0 %v1790
        %1892 = vmatpush1.bf16.msra.mxu0 %v1789
        %1893 = vmatprep.subr.bf16.mxu0 %v1794
        %1894 = vmatpush1.bf16.msra.mxu0 %v1793
        %1895 = vmatprep.subr.bf16.mxu0 %v1798
        %1896 = vmatpush1.bf16.msra.mxu0 %v1797
        %1897 = vmatprep.mubr.bf16.mxu0 %v1450
        %1898 = vmatmul.mubr.bf16.gmra.mrb[0].mxu0 %v1449
        %v1899 = vpop.f32.mrb[0].mxu0
        %v1900 = vadd.f32 %v1528, %v1899
        %v1901 = vpop.f32.mrb[0].mxu0
        %v1902 = vadd.f32 %v1532, %v1901
        %v1903 = vpop.f32.mrb[0].mxu0
        %v1904 = vadd.f32 %v1528, %v1903
        %v1905 = vpop.f32.mrb[0].mxu0
        %v1906 = vadd.f32 %v1532, %v1905
        %1907 = vmatprep.mubr.bf16.mxu0 %v1452
        %1908 = vmatmul.mubr.bf16.gmra.mrb[0].mxu0 %v1451
        %v1909 = vpop.f32.mrb[0].mxu0
        %v1910 = vadd.f32 %v1528, %v1909
        %v1911 = vpop.f32.mrb[0].mxu0
        %v1912 = vadd.f32 %v1532, %v1911
        %v1913 = vpop.f32.mrb[0].mxu0
        %v1914 = vadd.f32 %v1528, %v1913
        %v1915 = vpop.f32.mrb[0].mxu0
        %v1916 = vadd.f32 %v1532, %v1915
        %1917 = vmatprep.mubr.bf16.mxu0 %v1454
        %1918 = vmatmul.mubr.bf16.gmra.mrb[0].mxu0 %v1453
        %v1919 = vpop.f32.mrb[0].mxu0
        %v1920 = vadd.f32 %v1528, %v1919
        %v1921 = vpop.f32.mrb[0].mxu0
        %v1922 = vadd.f32 %v1532, %v1921
        %v1923 = vpop.f32.mrb[0].mxu0
        %v1924 = vadd.f32 %v1528, %v1923
        %v1925 = vpop.f32.mrb[0].mxu0
        %v1926 = vadd.f32 %v1532, %v1925
        %1927 = vmatprep.mubr.bf16.mxu0 %v1456
        %1928 = vmatmul.mubr.bf16.gmra.mrb[0].mxu0 %v1455
        %v1929 = vpop.f32.mrb[0].mxu0
        %v1930 = vadd.f32 %v1528, %v1929
        %v1931 = vpop.f32.mrb[0].mxu0
        %v1932 = vadd.f32 %v1532, %v1931
        %v1933 = vpop.f32.mrb[0].mxu0
        %v1934 = vadd.f32 %v1528, %v1933
        %v1935 = vpop.f32.mrb[0].mxu0
        %v1936 = vadd.f32 %v1532, %v1935
        %1937 = vmatprep.mubr.bf16.mxu0 %v1458
        %1938 = vmatmul.mubr.bf16.gmra.mrb[0].mxu0 %v1457
        %v1939 = vpop.f32.mrb[0].mxu0
        %v1940 = vadd.f32 %v1528, %v1939
        %v1941 = vpop.f32.mrb[0].mxu0
        %v1942 = vadd.f32 %v1532, %v1941
        %v1943 = vpop.f32.mrb[0].mxu0
        %v1944 = vadd.f32 %v1528, %v1943
        %v1945 = vpop.f32.mrb[0].mxu0
        %v1946 = vadd.f32 %v1532, %v1945
        %1947 = vdwg.mxu0
        %1948 = vmatprep.subr.bf16.mxu0 %v1740
        %1949 = vmatpush1.bf16.msra.mxu0 %v1739
        %1950 = vmatprep.subr.bf16.mxu0 %v1744
        %1951 = vmatpush1.bf16.msra.mxu0 %v1743
        %1952 = vmatprep.subr.bf16.mxu0 %v1748
        %1953 = vmatpush1.bf16.msra.mxu0 %v1747
        %1954 = vmatprep.subr.bf16.mxu0 %v1752
        %1955 = vmatpush1.bf16.msra.mxu0 %v1751
        %1956 = vmatprep.subr.bf16.mxu0 %v1756
        %1957 = vmatpush1.bf16.msra.mxu0 %v1755
        %1958 = vmatprep.subr.bf16.mxu0 %v1760
        %1959 = vmatpush1.bf16.msra.mxu0 %v1759
        %1960 = vmatprep.subr.bf16.mxu0 %v1764
        %1961 = vmatpush1.bf16.msra.mxu0 %v1763
        %1962 = vmatprep.subr.bf16.mxu0 %v1768
        %1963 = vmatpush1.bf16.msra.mxu0 %v1767
        %1964 = vmatprep.subr.bf16.mxu0 %v1772
        %1965 = vmatpush1.bf16.msra.mxu0 %v1771
        %1966 = vmatprep.subr.bf16.mxu0 %v1776
        %1967 = vmatpush1.bf16.msra.mxu0 %v1775
        %1968 = vmatprep.subr.bf16.mxu0 %v1780
        %1969 = vmatpush1.bf16.msra.mxu0 %v1779
        %1970 = vmatprep.subr.bf16.mxu0 %v1784
        %1971 = vmatpush1.bf16.msra.mxu0 %v1783
        %1972 = vmatprep.subr.bf16.mxu0 %v1788
        %1973 = vmatpush1.bf16.msra.mxu0 %v1787
        %1974 = vmatprep.subr.bf16.mxu0 %v1792
        %1975 = vmatpush1.bf16.msra.mxu0 %v1791
        %1976 = vmatprep.subr.bf16.mxu0 %v1796
        %1977 = vmatpush1.bf16.msra.mxu0 %v1795
        %1978 = vmatprep.subr.bf16.mxu0 %v1800
        %1979 = vmatpush1.bf16.msra.mxu0 %v1799
        %1980 = vmatprep.mubr.bf16.mxu0 %v1450
        %1981 = vmatmul.mubr.bf16.gmra.mrb[0].mxu0 %v1449
        %v1982 = vpop.f32.mrb[0].mxu0
        %v1983 = vadd.f32 %v1536, %v1982
        %v1984 = vpop.f32.mrb[0].mxu0
        %v1985 = vadd.f32 %v1540, %v1984
        %v1986 = vpop.f32.mrb[0].mxu0
        %v1987 = vadd.f32 %v1536, %v1986
        %v1988 = vpop.f32.mrb[0].mxu0
        %v1989 = vadd.f32 %v1540, %v1988
        %1990 = vmatprep.mubr.bf16.mxu0 %v1452
        %1991 = vmatmul.mubr.bf16.gmra.mrb[0].mxu0 %v1451
        %v1992 = vpop.f32.mrb[0].mxu0
        %v1993 = vadd.f32 %v1536, %v1992
        %v1994 = vpop.f32.mrb[0].mxu0
        %v1995 = vadd.f32 %v1540, %v1994
        %v1996 = vpop.f32.mrb[0].mxu0
        %v1997 = vadd.f32 %v1536, %v1996
        %v1998 = vpop.f32.mrb[0].mxu0
        %v1999 = vadd.f32 %v1540, %v1998
        %2000 = vmatprep.mubr.bf16.mxu0 %v1454
        %2001 = vmatmul.mubr.bf16.gmra.mrb[0].mxu0 %v1453
        %v2002 = vpop.f32.mrb[0].mxu0
        %v2003 = vadd.f32 %v1536, %v2002
        %v2004 = vpop.f32.mrb[0].mxu0
        %v2005 = vadd.f32 %v1540, %v2004
        %v2006 = vpop.f32.mrb[0].mxu0
        %v2007 = vadd.f32 %v1536, %v2006
        %v2008 = vpop.f32.mrb[0].mxu0
        %v2009 = vadd.f32 %v1540, %v2008
        %2010 = vmatprep.mubr.bf16.mxu0 %v1456
        %2011 = vmatmul.mubr.bf16.gmra.mrb[0].mxu0 %v1455
        %v2012 = vpop.f32.mrb[0].mxu0
        %v2013 = vadd.f32 %v1536, %v2012
        %v2014 = vpop.f32.mrb[0].mxu0
        %v2015 = vadd.f32 %v1540, %v2014
        %v2016 = vpop.f32.mrb[0].mxu0
        %v2017 = vadd.f32 %v1536, %v2016
        %v2018 = vpop.f32.mrb[0].mxu0
        %v2019 = vadd.f32 %v1540, %v2018
        %2020 = vmatprep.mubr.bf16.mxu0 %v1458
        %2021 = vmatmul.mubr.bf16.gmra.mrb[0].mxu0 %v1457
        %v2022 = vpop.f32.mrb[0].mxu0
        %v2023 = vadd.f32 %v1536, %v2022
        %v2024 = vpop.f32.mrb[0].mxu0
        %v2025 = vadd.f32 %v1540, %v2024
        %v2026 = vpop.f32.mrb[0].mxu0
        %v2027 = vadd.f32 %v1536, %v2026
        %v2028 = vpop.f32.mrb[0].mxu0
        %v2029 = vadd.f32 %v1540, %v2028
        %2030 = vdwg.mxu0
        %v2031 = vmax.f32 %v1900, 0.0
        %v2032 = vmax.f32 %v1902, 0.0
        %v2033 = vmax.f32 %v1983, 0.0
        %v2034 = vmax.f32 %v1985, 0.0
        %v2035 = vmax.f32 %v1904, 0.0
        %v2036 = vmax.f32 %v1906, 0.0
        %v2037 = vmax.f32 %v1987, 0.0
        %v2038 = vmax.f32 %v1989, 0.0
        %v2039 = vmax.f32 %v1910, 0.0
        %v2040 = vmax.f32 %v1912, 0.0
        %v2041 = vmax.f32 %v1993, 0.0
        %v2042 = vmax.f32 %v1995, 0.0
        %v2043 = vmax.f32 %v1914, 0.0
        %v2044 = vmax.f32 %v1916, 0.0
        %v2045 = vmax.f32 %v1997, 0.0
        %v2046 = vmax.f32 %v1999, 0.0
        %v2047 = vmax.f32 %v1920, 0.0
        %v2048 = vmax.f32 %v1922, 0.0
        %v2049 = vmax.f32 %v2003, 0.0
        %v2050 = vmax.f32 %v2005, 0.0
        %v2051 = vmax.f32 %v1924, 0.0
        %v2052 = vmax.f32 %v1926, 0.0
        %v2053 = vmax.f32 %v2007, 0.0
        %v2054 = vmax.f32 %v2009, 0.0
        %v2055 = vmax.f32 %v1930, 0.0
        %v2056 = vmax.f32 %v1932, 0.0
        %v2057 = vmax.f32 %v2013, 0.0
        %v2058 = vmax.f32 %v2015, 0.0
        %v2059 = vmax.f32 %v1934, 0.0
        %v2060 = vmax.f32 %v1936, 0.0
        %v2061 = vmax.f32 %v2017, 0.0
        %v2062 = vmax.f32 %v2019, 0.0
        %v2063 = vmax.f32 %v1940, 0.0
        %v2064 = vmax.f32 %v1942, 0.0
        %v2065 = vmax.f32 %v2023, 0.0
        %v2066 = vmax.f32 %v2025, 0.0
        %v2067 = vmax.f32 %v1944, 0.0
        %v2068 = vmax.f32 %v1946, 0.0
        %v2069 = vmax.f32 %v2027, 0.0
        %v2070 = vmax.f32 %v2029, 0.0
        %v2071 = vpack.c.bf16 %v2035, %v2031
        %v2072 = vpack.c.bf16 %v2036, %v2032
        %v2073 = vpack.c.bf16 %v2037, %v2033
        %v2074 = vpack.c.bf16 %v2038, %v2034
        %v2075 = vpack.c.bf16 %v2043, %v2039
        %v2076 = vpack.c.bf16 %v2044, %v2040
        %v2077 = vpack.c.bf16 %v2045, %v2041
        %v2078 = vpack.c.bf16 %v2046, %v2042
        %v2079 = vpack.c.bf16 %v2051, %v2047
        %v2080 = vpack.c.bf16 %v2052, %v2048
        %v2081 = vpack.c.bf16 %v2053, %v2049
        %v2082 = vpack.c.bf16 %v2054, %v2050
        %v2083 = vpack.c.bf16 %v2059, %v2055
        %v2084 = vpack.c.bf16 %v2060, %v2056
        %v2085 = vpack.c.bf16 %v2061, %v2057
        %v2086 = vpack.c.bf16 %v2062, %v2058
        %v2087 = vpack.c.bf16 %v2067, %v2063
        %v2088 = vpack.c.bf16 %v2068, %v2064
        %v2089 = vpack.c.bf16 %v2069, %v2065
        %v2090 = vpack.c.bf16 %v2070, %v2066
        %v2091 = vld [vmem:[#allocation10] sm:$0xf]
        %v2092 = vld [vmem:[#allocation10 + $0x4] sm:$0xf]
        %v2093 = vld [vmem:[#allocation10 + $0x8] sm:$0xf]
        %v2094 = vld [vmem:[#allocation10 + $0xc] sm:$0xf]
        %v2095 = vld [vmem:[#allocation10 + $0x10] sm:$0xf]
        %v2096 = vld [vmem:[#allocation10 + $0x14] sm:$0xf]
        %v2097 = vld [vmem:[#allocation10 + $0x18] sm:$0xf]
        %v2098 = vld [vmem:[#allocation10 + $0x1c] sm:$0xf]
        %v2099 = vld [vmem:[#allocation10 + $0x20] sm:$0xf]
        %v2100 = vld [vmem:[#allocation10 + $0x24] sm:$0xf]
        %v2101 = vld [vmem:[#allocation10 + $0x28] sm:$0xf]
        %v2102 = vld [vmem:[#allocation10 + $0x2c] sm:$0xf]
        %v2103 = vld [vmem:[#allocation10 + $0x30] sm:$0xf]
        %v2104 = vld [vmem:[#allocation10 + $0x34] sm:$0xf]
        %v2105 = vld [vmem:[#allocation10 + $0x38] sm:$0xf]
        %v2106 = vld [vmem:[#allocation10 + $0x3c] sm:$0xf]
        %v2107 = vld [vmem:[#allocation10 + $0x40] sm:$0xf]
        %v2108 = vld [vmem:[#allocation10 + $0x44] sm:$0xf]
        %v2109 = vld [vmem:[#allocation10 + $0x48] sm:$0xf]
        %v2110 = vld [vmem:[#allocation10 + $0x4c] sm:$0xf]
        %v2111 = vld [vmem:[#allocation10 + $0x50] sm:$0xf]
        %v2112 = vld [vmem:[#allocation10 + $0x54] sm:$0xf]
        %v2113 = vld [vmem:[#allocation10 + $0x58] sm:$0xf]
        %v2114 = vld [vmem:[#allocation10 + $0x5c] sm:$0xf]
        %v2115 = vld [vmem:[#allocation10 + $0x60] sm:$0xf]
        %v2116 = vld [vmem:[#allocation10 + $0x64] sm:$0xf]
        %v2117 = vld [vmem:[#allocation10 + $0x68] sm:$0xf]
        %v2118 = vld [vmem:[#allocation10 + $0x6c] sm:$0xf]
        %v2119 = vld [vmem:[#allocation10 + $0x70] sm:$0xf]
        %v2120 = vld [vmem:[#allocation10 + $0x74] sm:$0xf]
        %v2121 = vld [vmem:[#allocation10 + $0x78] sm:$0xf]
        %v2122 = vld [vmem:[#allocation10 + $0x7c] sm:$0xf]
        %v2123 = vld [vmem:[#allocation10 + $0x80] sm:$0xf]
        %v2124 = vld [vmem:[#allocation10 + $0x84] sm:$0xf]
        %v2125 = vld [vmem:[#allocation10 + $0x88] sm:$0xf]
        %v2126 = vld [vmem:[#allocation10 + $0x8c] sm:$0xf]
        %v2127 = vld [vmem:[#allocation10 + $0x90] sm:$0xf]
        %v2128 = vld [vmem:[#allocation10 + $0x94] sm:$0xf]
        %v2129 = vld [vmem:[#allocation10 + $0x98] sm:$0xf]
        %v2130 = vld [vmem:[#allocation10 + $0x9c] sm:$0xf]
        %v2131 = vld [vmem:[#allocation10 + $0xa0] sm:$0xf]
        %v2132 = vld [vmem:[#allocation10 + $0xa4] sm:$0xf]
        %v2133 = vld [vmem:[#allocation10 + $0xa8] sm:$0xf]
        %v2134 = vld [vmem:[#allocation10 + $0xac] sm:$0xf]
        %v2135 = vld [vmem:[#allocation10 + $0xb0] sm:$0xf]
        %v2136 = vld [vmem:[#allocation10 + $0xb4] sm:$0xf]
        %v2137 = vld [vmem:[#allocation10 + $0xb8] sm:$0xf]
        %v2138 = vld [vmem:[#allocation10 + $0xbc] sm:$0xf]
        %v2139 = vld [vmem:[#allocation10 + $0xc0] sm:$0xf]
        %v2140 = vld [vmem:[#allocation10 + $0xc4] sm:$0xf]
        %v2141 = vld [vmem:[#allocation10 + $0xc8] sm:$0xf]
        %v2142 = vld [vmem:[#allocation10 + $0xcc] sm:$0xf]
        %v2143 = vld [vmem:[#allocation10 + $0xd0] sm:$0xf]
        %v2144 = vld [vmem:[#allocation10 + $0xd4] sm:$0xf]
        %v2145 = vld [vmem:[#allocation10 + $0xd8] sm:$0xf]
        %v2146 = vld [vmem:[#allocation10 + $0xdc] sm:$0xf]
        %v2147 = vld [vmem:[#allocation10 + $0xe0] sm:$0xf]
        %v2148 = vld [vmem:[#allocation10 + $0xe4] sm:$0xf]
        %v2149 = vld [vmem:[#allocation10 + $0xe8] sm:$0xf]
        %v2150 = vld [vmem:[#allocation10 + $0xec] sm:$0xf]
        %v2151 = vld [vmem:[#allocation10 + $0xf0] sm:$0xf]
        %v2152 = vld [vmem:[#allocation10 + $0xf4] sm:$0xf]
        %v2153 = vld [vmem:[#allocation10 + $0xf8] sm:$0xf]
        %v2154 = vld [vmem:[#allocation10 + $0xfc] sm:$0xf]
        %v2155 = vld [vmem:[%s8] sm:$0x1]
        %v2157 = vlaneseq
        %v2158 = vshrl.u32 %v2157, 7
        %v2159 = vsub.s32 0, %v2158
        %v2160 = vrot.slane %v2155, %v2159
        %v2226 = vunpack.c.l.b16 %v2091
        %v2227 = vunpack.c.l.b16 %v2092
        %v2228 = vunpack.c.l.b16 %v2093
        %v2229 = vunpack.c.l.b16 %v2094
        %v2230 = vunpack.c.l.b16 %v2095
        %v2231 = vunpack.c.l.b16 %v2096
        %v2232 = vunpack.c.l.b16 %v2097
        %v2233 = vunpack.c.l.b16 %v2098
        %v2234 = vunpack.c.l.b16 %v2099
        %v2235 = vunpack.c.l.b16 %v2100
        %v2236 = vunpack.c.l.b16 %v2101
        %v2237 = vunpack.c.l.b16 %v2102
        %v2238 = vunpack.c.l.b16 %v2103
        %v2239 = vunpack.c.l.b16 %v2104
        %v2240 = vunpack.c.l.b16 %v2105
        %v2241 = vunpack.c.l.b16 %v2106
        %v2242 = vunpack.c.l.b16 %v2107
        %v2243 = vunpack.c.l.b16 %v2108
        %v2244 = vunpack.c.l.b16 %v2109
        %v2245 = vunpack.c.l.b16 %v2110
        %v2246 = vunpack.c.l.b16 %v2111
        %v2247 = vunpack.c.l.b16 %v2112
        %v2248 = vunpack.c.l.b16 %v2113
        %v2249 = vunpack.c.l.b16 %v2114
        %v2250 = vunpack.c.l.b16 %v2115
        %v2251 = vunpack.c.l.b16 %v2116
        %v2252 = vunpack.c.l.b16 %v2117
        %v2253 = vunpack.c.l.b16 %v2118
        %v2254 = vunpack.c.l.b16 %v2119
        %v2255 = vunpack.c.l.b16 %v2120
        %v2256 = vunpack.c.l.b16 %v2121
        %v2257 = vunpack.c.l.b16 %v2122
        %v2258 = vunpack.c.l.b16 %v2123
        %v2259 = vunpack.c.l.b16 %v2124
        %v2260 = vunpack.c.l.b16 %v2125
        %v2261 = vunpack.c.l.b16 %v2126
        %v2262 = vunpack.c.l.b16 %v2127
        %v2263 = vunpack.c.l.b16 %v2128
        %v2264 = vunpack.c.l.b16 %v2129
        %v2265 = vunpack.c.l.b16 %v2130
        %v2266 = vunpack.c.l.b16 %v2131
        %v2267 = vunpack.c.l.b16 %v2132
        %v2268 = vunpack.c.l.b16 %v2133
        %v2269 = vunpack.c.l.b16 %v2134
        %v2270 = vunpack.c.l.b16 %v2135
        %v2271 = vunpack.c.l.b16 %v2136
        %v2272 = vunpack.c.l.b16 %v2137
        %v2273 = vunpack.c.l.b16 %v2138
        %v2274 = vunpack.c.l.b16 %v2139
        %v2275 = vunpack.c.l.b16 %v2140
        %v2276 = vunpack.c.l.b16 %v2141
        %v2277 = vunpack.c.l.b16 %v2142
        %v2278 = vunpack.c.l.b16 %v2143
        %v2279 = vunpack.c.l.b16 %v2144
        %v2280 = vunpack.c.l.b16 %v2145
        %v2281 = vunpack.c.l.b16 %v2146
        %v2282 = vunpack.c.l.b16 %v2147
        %v2283 = vunpack.c.l.b16 %v2148
        %v2284 = vunpack.c.l.b16 %v2149
        %v2285 = vunpack.c.l.b16 %v2150
        %v2286 = vunpack.c.l.b16 %v2151
        %v2287 = vunpack.c.l.b16 %v2152
        %v2288 = vunpack.c.l.b16 %v2153
        %v2289 = vunpack.c.l.b16 %v2154
        %v2290 = vpack.c.b16 %v2227, %v2226
        %v2291 = vpack.c.b16 %v2229, %v2228
        %v2292 = vpack.c.b16 %v2231, %v2230
        %v2293 = vpack.c.b16 %v2233, %v2232
        %v2294 = vpack.c.b16 %v2235, %v2234
        %v2295 = vpack.c.b16 %v2237, %v2236
        %v2296 = vpack.c.b16 %v2239, %v2238
        %v2297 = vpack.c.b16 %v2241, %v2240
        %v2298 = vpack.c.b16 %v2243, %v2242
        %v2299 = vpack.c.b16 %v2245, %v2244
        %v2300 = vpack.c.b16 %v2247, %v2246
        %v2301 = vpack.c.b16 %v2249, %v2248
        %v2302 = vpack.c.b16 %v2251, %v2250
        %v2303 = vpack.c.b16 %v2253, %v2252
        %v2304 = vpack.c.b16 %v2255, %v2254
        %v2305 = vpack.c.b16 %v2257, %v2256
        %v2306 = vpack.c.b16 %v2259, %v2258
        %v2307 = vpack.c.b16 %v2261, %v2260
        %v2308 = vpack.c.b16 %v2263, %v2262
        %v2309 = vpack.c.b16 %v2265, %v2264
        %v2310 = vpack.c.b16 %v2267, %v2266
        %v2311 = vpack.c.b16 %v2269, %v2268
        %v2312 = vpack.c.b16 %v2271, %v2270
        %v2313 = vpack.c.b16 %v2273, %v2272
        %v2314 = vpack.c.b16 %v2275, %v2274
        %v2315 = vpack.c.b16 %v2277, %v2276
        %v2316 = vpack.c.b16 %v2279, %v2278
        %v2317 = vpack.c.b16 %v2281, %v2280
        %v2318 = vpack.c.b16 %v2283, %v2282
        %v2319 = vpack.c.b16 %v2285, %v2284
        %v2320 = vpack.c.b16 %v2287, %v2286
        %v2321 = vpack.c.b16 %v2289, %v2288
        %2354 = vmatprep.subr.bf16.mxu0 0
        %2355 = vmatpush1.bf16.msra.mxu0 %v2290
        %2356 = vmatprep.subr.bf16.mxu0 0
        %2357 = vmatpush1.bf16.msra.mxu0 %v2291
        %2358 = vmatprep.subr.bf16.mxu0 0
        %2359 = vmatpush1.bf16.msra.mxu0 %v2292
        %2360 = vmatprep.subr.bf16.mxu0 0
        %2361 = vmatpush1.bf16.msra.mxu0 %v2293
        %2362 = vmatprep.subr.bf16.mxu0 0
        %2363 = vmatpush1.bf16.msra.mxu0 %v2294
        %2364 = vmatprep.subr.bf16.mxu0 0
        %2365 = vmatpush1.bf16.msra.mxu0 %v2295
        %2366 = vmatprep.subr.bf16.mxu0 0
        %2367 = vmatpush1.bf16.msra.mxu0 %v2296
        %2368 = vmatprep.subr.bf16.mxu0 0
        %2369 = vmatpush1.bf16.msra.mxu0 %v2297
        %2370 = vmatprep.subr.bf16.mxu0 0
        %2371 = vmatpush1.bf16.msra.mxu0 %v2298
        %2372 = vmatprep.subr.bf16.mxu0 0
        %2373 = vmatpush1.bf16.msra.mxu0 %v2299
        %2374 = vmatprep.subr.bf16.mxu0 0
        %2375 = vmatpush1.bf16.msra.mxu0 %v2300
        %2376 = vmatprep.subr.bf16.mxu0 0
        %2377 = vmatpush1.bf16.msra.mxu0 %v2301
        %2378 = vmatprep.subr.bf16.mxu0 0
        %2379 = vmatpush1.bf16.msra.mxu0 %v2302
        %2380 = vmatprep.subr.bf16.mxu0 0
        %2381 = vmatpush1.bf16.msra.mxu0 %v2303
        %2382 = vmatprep.subr.bf16.mxu0 0
        %2383 = vmatpush1.bf16.msra.mxu0 %v2304
        %2384 = vmatprep.subr.bf16.mxu0 0
        %2385 = vmatpush1.bf16.msra.mxu0 %v2305
        %2386 = vmatprep.mubr.bf16.mxu0 %v2072
        %2387 = vmatmul.mubr.bf16.gmra.mrb[0].mxu0 %v2071
        %v2388 = vpop.f32.mrb[0].mxu0
        %v2389 = vadd.f32 %v2160, %v2388
        %v2390 = vpop.f32.mrb[0].mxu0
        %v2391 = vpop.f32.mrb[0].mxu0
        %v2392 = vadd.f32 %v2160, %v2391
        %v2393 = vpop.f32.mrb[0].mxu0
        %2394 = vmatprep.mubr.bf16.mxu0 %v2076
        %2395 = vmatmul.mubr.bf16.gmra.mrb[0].mxu0 %v2075
        %v2396 = vpop.f32.mrb[0].mxu0
        %v2397 = vadd.f32 %v2160, %v2396
        %v2398 = vpop.f32.mrb[0].mxu0
        %v2399 = vpop.f32.mrb[0].mxu0
        %v2400 = vadd.f32 %v2160, %v2399
        %v2401 = vpop.f32.mrb[0].mxu0
        %2402 = vmatprep.mubr.bf16.mxu0 %v2080
        %2403 = vmatmul.mubr.bf16.gmra.mrb[0].mxu0 %v2079
        %v2404 = vpop.f32.mrb[0].mxu0
        %v2405 = vadd.f32 %v2160, %v2404
        %v2406 = vpop.f32.mrb[0].mxu0
        %v2407 = vpop.f32.mrb[0].mxu0
        %v2408 = vadd.f32 %v2160, %v2407
        %v2409 = vpop.f32.mrb[0].mxu0
        %2410 = vmatprep.mubr.bf16.mxu0 %v2084
        %2411 = vmatmul.mubr.bf16.gmra.mrb[0].mxu0 %v2083
        %v2412 = vpop.f32.mrb[0].mxu0
        %v2413 = vadd.f32 %v2160, %v2412
        %v2414 = vpop.f32.mrb[0].mxu0
        %v2415 = vpop.f32.mrb[0].mxu0
        %v2416 = vadd.f32 %v2160, %v2415
        %v2417 = vpop.f32.mrb[0].mxu0
        %2418 = vmatprep.mubr.bf16.mxu0 %v2088
        %2419 = vmatmul.mubr.bf16.gmra.mrb[0].mxu0 %v2087
        %v2420 = vpop.f32.mrb[0].mxu0
        %v2421 = vadd.f32 %v2160, %v2420
        %v2422 = vpop.f32.mrb[0].mxu0
        %v2423 = vpop.f32.mrb[0].mxu0
        %v2424 = vadd.f32 %v2160, %v2423
        %v2425 = vpop.f32.mrb[0].mxu0
        %2426 = vdwg.mxu0
        %2427 = vmatprep.subr.bf16.mxu0 0
        %2428 = vmatpush1.bf16.msra.mxu0 %v2306
        %2429 = vmatprep.subr.bf16.mxu0 0
        %2430 = vmatpush1.bf16.msra.mxu0 %v2307
        %2431 = vmatprep.subr.bf16.mxu0 0
        %2432 = vmatpush1.bf16.msra.mxu0 %v2308
        %2433 = vmatprep.subr.bf16.mxu0 0
        %2434 = vmatpush1.bf16.msra.mxu0 %v2309
        %2435 = vmatprep.subr.bf16.mxu0 0
        %2436 = vmatpush1.bf16.msra.mxu0 %v2310
        %2437 = vmatprep.subr.bf16.mxu0 0
        %2438 = vmatpush1.bf16.msra.mxu0 %v2311
        %2439 = vmatprep.subr.bf16.mxu0 0
        %2440 = vmatpush1.bf16.msra.mxu0 %v2312
        %2441 = vmatprep.subr.bf16.mxu0 0
        %2442 = vmatpush1.bf16.msra.mxu0 %v2313
        %2443 = vmatprep.subr.bf16.mxu0 0
        %2444 = vmatpush1.bf16.msra.mxu0 %v2314
        %2445 = vmatprep.subr.bf16.mxu0 0
        %2446 = vmatpush1.bf16.msra.mxu0 %v2315
        %2447 = vmatprep.subr.bf16.mxu0 0
        %2448 = vmatpush1.bf16.msra.mxu0 %v2316
        %2449 = vmatprep.subr.bf16.mxu0 0
        %2450 = vmatpush1.bf16.msra.mxu0 %v2317
        %2451 = vmatprep.subr.bf16.mxu0 0
        %2452 = vmatpush1.bf16.msra.mxu0 %v2318
        %2453 = vmatprep.subr.bf16.mxu0 0
        %2454 = vmatpush1.bf16.msra.mxu0 %v2319
        %2455 = vmatprep.subr.bf16.mxu0 0
        %2456 = vmatpush1.bf16.msra.mxu0 %v2320
        %2457 = vmatprep.subr.bf16.mxu0 0
        %2458 = vmatpush1.bf16.msra.mxu0 %v2321
        %2459 = vmatprep.mubr.bf16.mxu0 %v2074
        %2460 = vmatmul.mubr.bf16.gmra.mrb[0].mxu0 %v2073
        %v2461 = vpop.f32.mrb[0].mxu0
        %v2462 = vadd.f32 %v2389, %v2461
        %v2463 = vpop.f32.mrb[0].mxu0
        %v2464 = vpop.f32.mrb[0].mxu0
        %v2465 = vadd.f32 %v2392, %v2464
        %v2466 = vpop.f32.mrb[0].mxu0
        %2467 = vmatprep.mubr.bf16.mxu0 %v2078
        %2468 = vmatmul.mubr.bf16.gmra.mrb[0].mxu0 %v2077
        %v2469 = vpop.f32.mrb[0].mxu0
        %v2470 = vadd.f32 %v2397, %v2469
        %v2471 = vpop.f32.mrb[0].mxu0
        %v2472 = vpop.f32.mrb[0].mxu0
        %v2473 = vadd.f32 %v2400, %v2472
        %v2474 = vpop.f32.mrb[0].mxu0
        %2475 = vmatprep.mubr.bf16.mxu0 %v2082
        %2476 = vmatmul.mubr.bf16.gmra.mrb[0].mxu0 %v2081
        %v2477 = vpop.f32.mrb[0].mxu0
        %v2478 = vadd.f32 %v2405, %v2477
        %v2479 = vpop.f32.mrb[0].mxu0
        %v2480 = vpop.f32.mrb[0].mxu0
        %v2481 = vadd.f32 %v2408, %v2480
        %v2482 = vpop.f32.mrb[0].mxu0
        %2483 = vmatprep.mubr.bf16.mxu0 %v2086
        %2484 = vmatmul.mubr.bf16.gmra.mrb[0].mxu0 %v2085
        %v2485 = vpop.f32.mrb[0].mxu0
        %v2486 = vadd.f32 %v2413, %v2485
        %v2487 = vpop.f32.mrb[0].mxu0
        %v2488 = vpop.f32.mrb[0].mxu0
        %v2489 = vadd.f32 %v2416, %v2488
        %v2490 = vpop.f32.mrb[0].mxu0
        %2491 = vmatprep.mubr.bf16.mxu0 %v2090
        %2492 = vmatmul.mubr.bf16.gmra.mrb[0].mxu0 %v2089
        %v2493 = vpop.f32.mrb[0].mxu0
        %v2494 = vadd.f32 %v2421, %v2493
        %v2495 = vpop.f32.mrb[0].mxu0
        %v2496 = vpop.f32.mrb[0].mxu0
        %v2497 = vadd.f32 %v2424, %v2496
        %v2498 = vpop.f32.mrb[0].mxu0
        %2499 = vdwg.mxu0
        %2500 = vst [vmem:[%s408] sm:$0xff] %v2462
        %2501 = vst [vmem:[%s408 + $0x8] sm:$0xff] %v2465
        %2502 = vst [vmem:[%s408 + $0x10] sm:$0xff] %v2470
        %2503 = vst [vmem:[%s408 + $0x18] sm:$0xff] %v2473
        %2504 = vst [vmem:[%s408 + $0x20] sm:$0xff] %v2478
        %2505 = vst [vmem:[%s408 + $0x28] sm:$0xff] %v2481
        %2506 = vst [vmem:[%s408 + $0x30] sm:$0xff] %v2486
        %2507 = vst [vmem:[%s408 + $0x38] sm:$0xff] %v2489
        %2508 = vst [vmem:[%s408 + $0x40] sm:$0xff] %v2494
        %2509 = vst [vmem:[%s408 + $0x48] sm:$0xff] %v2497
        %s2510 = sand.u32 %s230, 1
        %s2511 = scalar_lea.sflag [#allocation4], %s2510
        %s2512 = sand.u32 %s230, 1
        %s2513 = smul.addr %s2512, 80
        %s2514 = scalar_lea.vmem [#allocation11], %s2513
        // Predicated region
        $region77: #{tpu_custom_call.1} parent=55 // pred_check
          %p2515 = pneg %p240
        $region78: #{tpu_custom_call.1} parent=55 // pred_check_branch
          %2517 = sbr.rel (%p2515) target = $region80
        $region79: #{tpu_custom_call.1} parent=55 // pred_region
          %s2518 = smul.u32 10, %s28
          %s2520 = ssub.s32 1280, 1280
          %2521 = vsyncadd %s2511, %s2520
          %s2522 = smul.addr %s2518, 128
          %s2523 = scalar_lea.hbm %s9, %s2522
          %s2524 = sshll.u32 %s2514, 4
          %s2525 = int_to_ptr.vmem [resolvable:$true] %s2524
          %2530 = dma.vmem_to_hbm [thread:$0]  %s2525, 1280, %s2523, %s2511, 128, 128, 8
        $region80: #{tpu_custom_call.1} parent=55 // pred_fallthru
          _
      $region56: #{tpu_custom_call.1} parent=5 // pred_fallthru
        _
      %p2531 = scmp.le.s32.totalorder 2, %s23
      // Predicated region
      $region81: #{tpu_custom_call.1} parent=5 // pred_check
        %p2532 = pneg %p2531
      $region82: #{tpu_custom_call.1} parent=5 // pred_check_branch
        %2534 = sbr.rel (%p2532) target = $region84
      $region83: #{tpu_custom_call.1} parent=5 // pred_region
        %s2535 = ssub.s32 %s23, 2
        // Predicated region
        $region85: #{tpu_custom_call.1} parent=83 // pred_check
          %p2536 = pneg %p246
        $region86: #{tpu_custom_call.1} parent=83 // pred_check_branch
          %2538 = sbr.rel (%p2536) target = $region88
        $region87: #{tpu_custom_call.1} parent=83 // pred_region
          %s2539 = sand.u32 %s231, 1
          %s2540 = scalar_lea.sflag [#allocation4], %s2539
          %s2541 = sand.u32 %s231, 1
          %s2542 = smul.addr %s2541, 80
          %s2543 = scalar_lea.vmem [#allocation11], %s2542
          %2544 = dma.done %s2540, 1280
        $region88: #{tpu_custom_call.1} parent=83 // pred_fallthru
          _
      $region84: #{tpu_custom_call.1} parent=5 // pred_fallthru
        _
    $region6: #{tpu_custom_call.1} parent=1 // loop_footer
      %s27 = sadd.s32 1, %s23
    $region7: #{tpu_custom_call.1} parent=1 // loop_footer_branch
      %22 = sbr.rel target = $region3
    $region8: #{tpu_custom_call.1} parent=1 // loop_exit
      _
    %2545 = vsyncpa [#allocation3], 1
    %s2546 = scalar_lea.sflag [#allocation3], 1
    %2547 = vsyncpa %s2546, 1
    %2548 = vsyncpa [#allocation6], 1
    %2549 = vsyncpa [#allocation9], 1
    %2550 = vsyncpa [#allocation4], 1
    %s2551 = scalar_lea.sflag [#allocation4], 1
    %2552 = vsyncpa %s2551, 1

</llo_original>
